<compile_context>
chip_gen: v6e
topology: v6e:2x2x1
jax: 0.10.0
libtpu: 0.0.40
codegen_flags: <defaults>
</compile_context>

<pallas_src>
import functools

import numpy as np
import jax
import jax.numpy as jnp
from jax.experimental import pallas as pl
from jax.experimental.pallas import tpu as pltpu

LANE = 128


def _round_up(x, m):
    return (x + m - 1) // m * m


def _pad_last(a, size):
    pad = size - a.shape[-1]
    if pad == 0:
        return a
    cfg = [(0, 0)] * (a.ndim - 1) + [(0, pad)]
    return jnp.pad(a, cfg)


# ---------------------------------------------------------------------------
# Kernel 1: fused 3x3x3 conv + folded BN + ReLU over a channels-last, spatially
# flattened zero-padded volume.
#   - xa_ref / xb_ref are two consecutive row blocks of the flattened padded
#     volume (block m and m+1): together they cover the halo'd window needed
#     by all 27 taps of block m (requires block_m >= max tap offset).
#   - w_ref / s_ref / b_ref are VMEM-resident (constant index_map).
#   - Accumulation happens directly into the resident f32 output block.
# ---------------------------------------------------------------------------
def _conv3x3_bn_relu_kernel(deltas, xa_ref, xb_ref, w_ref, s_ref, b_ref,
                            o_ref, xw_ref):
    block_m = xa_ref.shape[0]

    # Stage the halo'd row window (2 * block_m rows) in one VMEM scratch buffer.
    xw_ref[pl.ds(0, block_m), :] = xa_ref[...]
    xw_ref[pl.ds(block_m, block_m), :] = xb_ref[...]

    # First tap initializes the resident output block, remaining taps accumulate.
    o_ref[...] = jnp.dot(xw_ref[pl.ds(deltas[0], block_m), :], w_ref[0],
                         preferred_element_type=jnp.float32)
    for t in range(1, len(deltas)):
        o_ref[...] += jnp.dot(xw_ref[pl.ds(deltas[t], block_m), :], w_ref[t],
                              preferred_element_type=jnp.float32)

    # Folded BatchNorm + ReLU epilogue in f32 (v5e-safe VPU math).
    o_ref[...] = jnp.maximum(o_ref[...] * s_ref[...] + b_ref[...], 0.0)


def conv3x3_bn_relu_flat(x_flat, w_taps, scale, bias, deltas, *, block_m):
    """x_flat: (rows, Cin) bf16 flattened padded volume (rows = (nb+1)*block_m),
       w_taps: (27, Cin, Cout_pad) bf16, scale/bias: (1, Cout_pad) f32."""
    rows, cin = x_flat.shape
    n_taps, _, cout_p = w_taps.shape
    nb = rows // block_m - 1          # last block only supplies the halo
    assert max(deltas) < block_m, "row block must cover the 27-tap halo"

    kernel = functools.partial(_conv3x3_bn_relu_kernel, tuple(int(d) for d in deltas))
    return pl.pallas_call(
        kernel,
        out_shape=jax.ShapeDtypeStruct((nb * block_m, cout_p), jnp.float32),
        grid_spec=pltpu.PrefetchScalarGridSpec(
            num_scalar_prefetch=0,
            grid=(nb,),
            in_specs=[
                pl.BlockSpec((block_m, cin), lambda m: (m, 0)),        # current block
                pl.BlockSpec((block_m, cin), lambda m: (m + 1, 0)),    # halo block
                pl.BlockSpec((n_taps, cin, cout_p), lambda m: (0, 0, 0)),  # resident weights
                pl.BlockSpec((1, cout_p), lambda m: (0, 0)),           # resident BN scale
                pl.BlockSpec((1, cout_p), lambda m: (0, 0)),           # resident BN bias
            ],
            out_specs=pl.BlockSpec((block_m, cout_p), lambda m: (m, 0)),
            scratch_shapes=[pltpu.VMEM((2 * block_m, cin), x_flat.dtype)],
        ),
        compiler_params=pltpu.CompilerParams(
            dimension_semantics=("parallel",)),
    )(x_flat, x_flat, w_taps, scale, bias)


def bottleneck_conv3x3(cat_cl, w27, scale_p, bias_p, out_c, *, block_m_target=512):
    """cat_cl: (N, D, H, W, Ccat) f32 -> (N, D, H, W, out_c) f32."""
    N, D, H, W, C = cat_cl.shape
    cout_p = w27.shape[-1]
    Dp, Hp, Wp = D + 2, H + 2, W + 2

    xp = jnp.pad(cat_cl, ((0, 0), (1, 1), (1, 1), (1, 1), (0, 0))).astype(jnp.bfloat16)
    x_flat = xp.reshape(N * Dp * Hp * Wp, C)

    # Flat-row offset of tap (dz, dy, dx) relative to the output's base row.
    deltas = tuple(dz * Hp * Wp + dy * Wp + dx
                   for dz in range(3) for dy in range(3) for dx in range(3))
    delta_max = deltas[-1]
    Mp = N * Dp * Hp * Wp

    block_m = max(block_m_target, _round_up(delta_max + 1, 128))
    nb = max(2, -(-Mp // block_m))        # >=2 parallel blocks -> both v7x TCs busy
    rows_in = (nb + 1) * block_m          # +1 block so the halo read never goes OOB
    x_flat = jnp.pad(x_flat, ((0, rows_in - Mp), (0, 0)))

    out = conv3x3_bn_relu_flat(x_flat, w27, scale_p, bias_p, deltas, block_m=block_m)
    # Keep only rows whose base coordinate is a valid (un-padded) output voxel.
    out = out[:Mp].reshape(N, Dp, Hp, Wp, cout_p)[:, :D, :H, :W, :out_c]
    return out


# ---------------------------------------------------------------------------
# Kernel 2: all pyramid-stage 1x1x1 convs + folded BN + ReLU fused into one
# pallas_call; grid axis = stage index (rows padded to a common count).
# ---------------------------------------------------------------------------
def _stage_matmul_bn_relu_kernel(x_ref, w_ref, s_ref, b_ref, o_ref):
    y = jnp.dot(x_ref[...], w_ref[...], preferred_element_type=jnp.float32)
    o_ref[...] = jnp.maximum(y * s_ref[...] + b_ref[...], 0.0)


def stages_conv1x1_bn_relu(x_stack, w_stack, s_stack, b_stack):
    """x_stack: (S, R, Cin) bf16, w_stack: (S, Cin, Cout_pad) bf16,
       s/b_stack: (S, 1, Cout_pad) f32 -> (S, R, Cout_pad) f32."""
    S, R, Cin = x_stack.shape
    cout_p = w_stack.shape[-1]
    return pl.pallas_call(
        _stage_matmul_bn_relu_kernel,
        out_shape=jax.ShapeDtypeStruct((S, R, cout_p), jnp.float32),
        grid_spec=pltpu.PrefetchScalarGridSpec(
            num_scalar_prefetch=0,
            grid=(S,),
            in_specs=[
                pl.BlockSpec((None, R, Cin), lambda g: (g, 0, 0)),
                pl.BlockSpec((None, Cin, cout_p), lambda g: (g, 0, 0)),
                pl.BlockSpec((None, 1, cout_p), lambda g: (g, 0, 0)),
                pl.BlockSpec((None, 1, cout_p), lambda g: (g, 0, 0)),
            ],
            out_specs=pl.BlockSpec((None, R, cout_p), lambda g: (g, 0, 0)),
        ),
        compiler_params=pltpu.CompilerParams(
            dimension_semantics=("parallel",)),
    )(x_stack, w_stack, s_stack, b_stack)


# ---------------------------------------------------------------------------
# Glue: adaptive-avg-pool / trilinear-upsample as separable linear maps (XLA).
# ---------------------------------------------------------------------------
def adaptive_pool_matrix(out_size, in_size):
    m = np.zeros((out_size, in_size), np.float32)
    for i in range(out_size):
        start = (i * in_size) // out_size
        end = -((-(i + 1) * in_size) // out_size)  # ceil
        m[i, start:end] = 1.0 / (end - start)
    return jnp.asarray(m)


def interp_matrix_align_corners(out_size, in_size):
    m = np.zeros((out_size, in_size), np.float32)
    if in_size == 1:
        m[:, 0] = 1.0
        return jnp.asarray(m)
    for i in range(out_size):
        c = i * (in_size - 1) / (out_size - 1) if out_size > 1 else 0.0
        lo = min(int(np.floor(c)), in_size - 2)
        frac = c - lo
        m[i, lo] += 1.0 - frac
        m[i, lo + 1] += frac
    return jnp.asarray(m)


def build_taps(x_cl, k=3):
    """Reference-path only: (N,D,H,W,C) -> (k^3, N*D*H*W, C) shifted views."""
    N, D, H, W, C = x_cl.shape
    p = k // 2
    xp = jnp.pad(x_cl, ((0, 0), (p, p), (p, p), (p, p), (0, 0)))
    taps = []
    for dz in range(k):
        for dy in range(k):
            for dx in range(k):
                taps.append(
                    xp[:, dz:dz + D, dy:dy + H, dx:dx + W, :].reshape(N * D * H * W, C))
    return jnp.stack(taps, axis=0)


def fold_bn(gamma, beta, mean, var, eps=1e-5):
    scale = gamma / jnp.sqrt(var + eps)
    return scale, beta - mean * scale


# ---------------------------------------------------------------------------
# Parameters (deterministic, synthetic) and forward pass.
# ---------------------------------------------------------------------------
def init_params(key, in_c, pool_sizes):
    out_c = in_c // len(pool_sizes)
    params = {"stages": [], "out_c": out_c, "pool_sizes": tuple(pool_sizes)}
    for s in pool_sizes:
        key, k1, k2, k3, k4, k5 = jax.random.split(key, 6)
        params["stages"].append(dict(
            size=s,
            w=jax.random.normal(k1, (in_c, out_c), jnp.float32) * 0.1,
            gamma=jax.random.uniform(k2, (out_c,), jnp.float32, minval=0.5, maxval=1.5),
            beta=jax.random.normal(k3, (out_c,), jnp.float32) * 0.1,
            mean=jax.random.normal(k4, (out_c,), jnp.float32) * 0.1,
            var=jax.random.uniform(k5, (out_c,), jnp.float32, minval=0.5, maxval=1.5),
        ))
    cat_c = in_c + out_c * len(pool_sizes)
    key, k1, k2, k3, k4, k5 = jax.random.split(key, 6)
    params["bottleneck"] = dict(
        w=(jax.random.normal(k1, (3, 3, 3, cat_c, out_c), jnp.float32) * 0.05
           ).reshape(27, cat_c, out_c),
        gamma=jax.random.uniform(k2, (out_c,), jnp.float32, minval=0.5, maxval=1.5),
        beta=jax.random.normal(k3, (out_c,), jnp.float32) * 0.1,
        mean=jax.random.normal(k4, (out_c,), jnp.float32) * 0.1,
        var=jax.random.uniform(k5, (out_c,), jnp.float32, minval=0.5, maxval=1.5),
    )
    return params


def psp_forward(x_ncdhw, params, *, use_pallas=True):
    N, C, D, H, W = x_ncdhw.shape
    out_c = params["out_c"]
    cout_p = _round_up(out_c, LANE)
    x = jnp.transpose(x_ncdhw, (0, 2, 3, 4, 1)).astype(jnp.float32)  # -> NDHWC
    hi = jax.lax.Precision.HIGHEST

    # ---- pyramid stages: adaptive avg-pool (XLA), fused 1x1 conv+BN+ReLU (Pallas) ----
    sizes, pooled_flats, scales, biases = [], [], [], []
    for st in params["stages"]:
        s = st["size"]
        Pd, Ph, Pw = (adaptive_pool_matrix(s, D), adaptive_pool_matrix(s, H),
                      adaptive_pool_matrix(s, W))
        pooled = jnp.einsum('ndhwc,pd,qh,rw->npqrc', x, Pd, Ph, Pw, precision=hi)
        sizes.append(s)
        pooled_flats.append(pooled.reshape(N * s * s * s, C))
        sc, bi = fold_bn(st["gamma"], st["beta"], st["mean"], st["var"])
        scales.append(sc)
        biases.append(bi)

    if use_pallas:
        r_pad = _round_up(max(f.shape[0] for f in pooled_flats), 16)
        x_stack = jnp.stack(
            [jnp.pad(f, ((0, r_pad - f.shape[0]), (0, 0))) for f in pooled_flats]
        ).astype(jnp.bfloat16)
        w_stack = jnp.stack(
            [_pad_last(st["w"], cout_p) for st in params["stages"]]
        ).astype(jnp.bfloat16)
        s_stack = jnp.stack([_pad_last(sc.reshape(1, -1), cout_p) for sc in scales])
        b_stack = jnp.stack([_pad_last(bi.reshape(1, -1), cout_p) for bi in biases])
        y_stack = stages_conv1x1_bn_relu(x_stack, w_stack,
                                         s_stack.astype(jnp.float32),
                                         b_stack.astype(jnp.float32))

    pyramids = [x]
    for i, s in enumerate(sizes):
        if use_pallas:
            y = y_stack[i, :N * s * s * s, :out_c]
        else:
            # Reference path mirrors the bf16 MXU operand rounding, f32 accumulate.
            f = pooled_flats[i].astype(jnp.bfloat16).astype(jnp.float32)
            wr = params["stages"][i]["w"].astype(jnp.bfloat16).astype(jnp.float32)
            y = jnp.maximum(f @ wr * scales[i] + biases[i], 0.0)
        y = y.reshape(N, s, s, s, out_c)
        Ud, Uh, Uw = (interp_matrix_align_corners(D, s),
                      interp_matrix_align_corners(H, s),
                      interp_matrix_align_corners(W, s))
        pyramids.append(jnp.einsum('npqrc,dp,hq,wr->ndhwc', y, Ud, Uh, Uw, precision=hi))

    cat = jnp.concatenate(pyramids, axis=-1)   # (N, D, H, W, in_c + out_c*len(pool_sizes))
    bt = params["bottleneck"]
    scale, bias = fold_bn(bt["gamma"], bt["beta"], bt["mean"], bt["var"])

    if use_pallas:
        w27 = _pad_last(bt["w"], cout_p).astype(jnp.bfloat16)
        out = bottleneck_conv3x3(
            cat, w27,
            _pad_last(scale.reshape(1, -1), cout_p).astype(jnp.float32),
            _pad_last(bias.reshape(1, -1), cout_p).astype(jnp.float32),
            out_c)
    else:
        cat_r = cat.astype(jnp.bfloat16).astype(jnp.float32)
        w_r = bt["w"].astype(jnp.bfloat16).astype(jnp.float32)
        taps = build_taps(cat_r, 3)
        out = jnp.maximum(jnp.einsum('tmc,tco->mo', taps, w_r) * scale + bias, 0.0)
        out = out.reshape(N, D, H, W, out_c)

    # TODO(synk): Dropout3d(0.1) is identity in eval mode; training-mode channel dropout omitted.
    return jnp.transpose(out, (0, 4, 1, 2, 3))    # back to NCDHW


if __name__ == "__main__":
    key = jax.random.PRNGKey(0)
    kx, kp = jax.random.split(key)
    N, in_c, D, H, W = 2, 16, 8, 8, 8
    pool_sizes = (1, 2, 4, 8)

    x = jax.random.normal(kx, (N, in_c, D, H, W), jnp.float32)
    params = init_params(kp, in_c, pool_sizes)

    out = jax.block_until_ready(psp_forward(x, params, use_pallas=True))
    ref = jax.block_until_ready(psp_forward(x, params, use_pallas=False))

    assert out.shape == (N, params["out_c"], D, H, W), out.shape
    np.testing.assert_allclose(np.asarray(out), np.asarray(ref), rtol=2e-2, atol=2e-2)
    print("KERNEL_OK")
</pallas_src>

<mosaic_0001>
module attributes {stable_mosaic.version = 11 : i64} {
  func.func @_stage_matmul_bn_relu_kernel(%arg0: i32, %arg1: memref<1x1024x16xbf16, #tpu.memory_space<vmem>>, %arg2: memref<1x16x128xbf16, #tpu.memory_space<vmem>>, %arg3: memref<1x1x128xf32, #tpu.memory_space<vmem>>, %arg4: memref<1x1x128xf32, #tpu.memory_space<vmem>>, %arg5: memref<1x1024x128xf32, #tpu.memory_space<vmem>>) attributes {dimension_semantics = [#tpu.dimension_semantics<parallel>], iteration_bounds = array<i64: 4>, scalar_prefetch = 0 : i64, scratch_operands = 0 : i64, tpu.core_type = #tpu.core_type<tc>, window_params = [{transform_indices = @transform_0, window_bounds = array<i64: 1, 1024, 16>}, {transform_indices = @transform_1, window_bounds = array<i64: 1, 16, 128>}, {transform_indices = @transform_2, window_bounds = array<i64: 1, 1, 128>}, {transform_indices = @transform_3, window_bounds = array<i64: 1, 1, 128>}, {transform_indices = @transform_4, window_bounds = array<i64: 1, 1024, 128>}]} {
    %c0 = arith.constant 0 : index
    %c0_0 = arith.constant 0 : index
    %c0_1 = arith.constant 0 : index
    %0 = vector.load %arg1[%c0, %c0_0, %c0_1] : memref<1x1024x16xbf16, #tpu.memory_space<vmem>>, vector<1x1024x16xbf16>
    %1 = vector.shape_cast %0 : vector<1x1024x16xbf16> to vector<1024x16xbf16>
    %c0_2 = arith.constant 0 : index
    %c0_3 = arith.constant 0 : index
    %c0_4 = arith.constant 0 : index
    %2 = vector.load %arg2[%c0_2, %c0_3, %c0_4] : memref<1x16x128xbf16, #tpu.memory_space<vmem>>, vector<1x16x128xbf16>
    %3 = vector.shape_cast %2 : vector<1x16x128xbf16> to vector<16x128xbf16>
    %cst = arith.constant dense<0.000000e+00> : vector<1024x128xf32>
    %4 = tpu.matmul %1, %3, %cst {dimension_numbers = #tpu.dot_dimension_numbers<[1], [0], [0], [1], [0, 0, 1, 1], [], []>} : vector<1024x16xbf16>, vector<16x128xbf16>, vector<1024x128xf32> -> vector<1024x128xf32>
    %c0_5 = arith.constant 0 : index
    %c0_6 = arith.constant 0 : index
    %c0_7 = arith.constant 0 : index
    %5 = vector.load %arg3[%c0_5, %c0_6, %c0_7] : memref<1x1x128xf32, #tpu.memory_space<vmem>>, vector<1x1x128xf32>
    %6 = vector.shape_cast %5 : vector<1x1x128xf32> to vector<1x128xf32>
    %7 = vector.broadcast %6 : vector<1x128xf32> to vector<1024x128xf32>
    %8 = arith.mulf %4, %7 : vector<1024x128xf32>
    %c0_8 = arith.constant 0 : index
    %c0_9 = arith.constant 0 : index
    %c0_10 = arith.constant 0 : index
    %9 = vector.load %arg4[%c0_8, %c0_9, %c0_10] : memref<1x1x128xf32, #tpu.memory_space<vmem>>, vector<1x1x128xf32>
    %10 = vector.shape_cast %9 : vector<1x1x128xf32> to vector<1x128xf32>
    %11 = vector.broadcast %10 : vector<1x128xf32> to vector<1024x128xf32>
    %12 = arith.addf %8, %11 : vector<1024x128xf32>
    %cst_11 = arith.constant 0.000000e+00 : f32
    %13 = vector.broadcast %cst_11 : f32 to vector<1024x128xf32>
    %14 = arith.maximumf %12, %13 : vector<1024x128xf32>
    %c0_12 = arith.constant 0 : index
    %c0_13 = arith.constant 0 : index
    %c0_14 = arith.constant 0 : index
    %15 = vector.load %arg5[%c0_12, %c0_13, %c0_14] : memref<1x1024x128xf32, #tpu.memory_space<vmem>>, vector<1x1024x128xf32>
    %16 = vector.shape_cast %15 : vector<1x1024x128xf32> to vector<1024x128xf32>
    %17 = vector.shape_cast %14 : vector<1024x128xf32> to vector<1x1024x128xf32>
    tpu.vector_store %arg5[%c0_12, %c0_13, %c0_14], %17 {strides = array<i32>} : memref<1x1024x128xf32, #tpu.memory_space<vmem>>, vector<1x1024x128xf32>,
    return
  }
  func.func @transform_0(%arg0: i32) -> (i32, i32, i32) {
    %c0_i32 = arith.constant 0 : i32
    %c0_i32_0 = arith.constant 0 : i32
    %c0_i32_1 = arith.constant 0 : i32
    return %arg0, %c0_i32, %c0_i32_0 : i32, i32, i32
  }
  func.func @transform_1(%arg0: i32) -> (i32, i32, i32) {
    %c0_i32 = arith.constant 0 : i32
    %c0_i32_0 = arith.constant 0 : i32
    %c0_i32_1 = arith.constant 0 : i32
    return %arg0, %c0_i32, %c0_i32_0 : i32, i32, i32
  }
  func.func @transform_2(%arg0: i32) -> (i32, i32, i32) {
    %c0_i32 = arith.constant 0 : i32
    %c0_i32_0 = arith.constant 0 : i32
    %c0_i32_1 = arith.constant 0 : i32
    return %arg0, %c0_i32, %c0_i32_0 : i32, i32, i32
  }
  func.func @transform_3(%arg0: i32) -> (i32, i32, i32) {
    %c0_i32 = arith.constant 0 : i32
    %c0_i32_0 = arith.constant 0 : i32
    %c0_i32_1 = arith.constant 0 : i32
    return %arg0, %c0_i32, %c0_i32_0 : i32, i32, i32
  }
  func.func @transform_4(%arg0: i32) -> (i32, i32, i32) {
    %c0_i32 = arith.constant 0 : i32
    %c0_i32_0 = arith.constant 0 : i32
    %c0_i32_1 = arith.constant 0 : i32
    return %arg0, %c0_i32, %c0_i32_0 : i32, i32, i32
  }
}

</mosaic_0001>

<llo_original>
// kernel: tpu_custom_call.1
$region0: #{tpu_custom_call.1}
  #allocation0 [shape = 'u32[]', space=smem, size = 0x4, offset = 0x4, fixed_abs, tag = 'smem constant byte address 0x4 - core index']
  #allocation1 [shape = 'u32[144,128]{1,0:T(1,128)}', space=vmem, size = 0x12000, scoped, tag = 'internal scratch']
  %s0 = inlined_call_operand.vmem [shape: bf16[4,1024,16], index: 0, kind: input, shape index: {}]
  %s1 = inlined_call_operand.hbm [shape: bf16[4,16,128], index: 1, kind: input, shape index: {}]
  %s2 = inlined_call_operand.hbm [shape: f32[4,1,128], index: 2, kind: input, shape index: {}]
  %s3 = inlined_call_operand.hbm [shape: f32[4,1,128], index: 3, kind: input, shape index: {}]
  %s4 = inlined_call_operand.hbm [shape: f32[4,1024,128], index: 4, kind: output, shape index: {}]
  %s5 = sld [smem:[#allocation0]]
  $region61: #{tpu_custom_call.1} parent=0
    _
  %s7 = ssub.s32 1, %s5
  %s8 = scalar_select 0, %s7, %s5
  $region1: #{tpu_custom_call.1} parent=0
    #allocation2 [shape = 'u8[8192]{0}', space=vmem, size = 0x2000, scoped, tag = 'input window, operand 1']
    #allocation3 [shape = 's32[2]{0}', space=sflag, size = 0x8, scoped, tag = 'scoped memory for tpu_custom_call.1']
    #allocation4 [shape = 's32[2]{0}', space=sflag, size = 0x8, scoped, tag = 'scoped memory for tpu_custom_call.1']
    #allocation5 [shape = 'u8[1024]{0}', space=vmem, size = 0x400, scoped, tag = 'input window, operand 2']
    #allocation6 [shape = 's32[2]{0}', space=sflag, size = 0x8, scoped, tag = 'scoped memory for tpu_custom_call.1']
    #allocation7 [shape = 'u8[1024]{0}', space=vmem, size = 0x400, scoped, tag = 'input window, operand 3']
    #allocation8 [shape = 'u8[1048576]{0}', space=vmem, size = 0x100000, scoped, tag = 'output window, operand 0']
    %9 = vsyncpa [#allocation3], 0
    %s10 = scalar_lea.sflag [#allocation3], 1
    %11 = vsyncpa %s10, 0
    %12 = vsyncpa [#allocation6], 0
    %s13 = scalar_lea.sflag [#allocation6], 1
    %14 = vsyncpa %s13, 0
    %15 = vsyncpa [#allocation4], 0
    %s16 = scalar_lea.sflag [#allocation4], 1
    %17 = vsyncpa %s16, 0
    loop: start=0, step=1, limit=6
    $region2: #{tpu_custom_call.1} parent=1 // loop_pre_header
      _
    $region3: #{tpu_custom_call.1} parent=1 // loop_header
      %s19 = sphi 0, %s23
      %p20 = scmp.ge.s32.totalorder %s19, 6
      %s29 = sphi 0, %s31
      %s32 = sphi 0, %s29
      %s33 = sphi 0, %s32
      %s49 = sphi 0, %s33
      %s55 = sphi 0, %s57
      %s58 = sphi 0, %s55
      %s59 = sphi 0, %s58
      %s75 = sphi 0, %s59
      %s81 = sphi 0, %s83
      %s84 = sphi 0, %s81
      %s85 = sphi 0, %s84
      %s101 = sphi 0, %s85
      %s107 = sphi 0, %s109
      %s110 = sphi 0, %s107
      %s111 = sphi 0, %s110
      %s127 = sphi 0, %s111
      %s133 = sphi 0, %s135
      %s136 = sphi 0, %s133
      %s137 = sphi 0, %s136
      %s153 = sphi 0, %s137
    $region4: #{tpu_custom_call.1} parent=1 // loop_header_branch
      %22 = sbr.rel (%p20) target = $region8
    $region5: #{tpu_custom_call.1} parent=1 // loop_body
      %s24 = ssub.s32 %s19, 1
      %s25 = ssub.s32 %s19, 2
      %s26 = sadd.s32 %s19, 1
      %s27 = ssub.s32 %s19, %s26
      %p28 = scmp.eq.s32.totalorder %s27, 0
      %s30 = sadd.s32 %s29, 1
      %s31 = scalar_select %p28, %s29, %s30
      %p34 = pneg %p28
      %p35 = scmp.eq.s32.totalorder %s19, 3
      %p36 = por %p34, %p35
      %p37 = scmp.ne.s32.totalorder %s29, %s32
      %p38 = scmp.eq.s32.totalorder %s19, 0
      %p39 = por %p37, %p38
      %p40 = scmp.ne.s32.totalorder %s29, %s32
      %p41 = scmp.eq.s32.totalorder %s24, 3
      %p42 = por %p40, %p41
      %p43 = scmp.ne.s32.totalorder %s32, %s33
      %p44 = scmp.eq.s32.totalorder %s24, 0
      %p45 = por %p43, %p44
      %p46 = scmp.ne.s32.totalorder %s32, %s33
      %p47 = scmp.eq.s32.totalorder %s25, 3
      %p48 = por %p46, %p47
      %p50 = scmp.ne.s32.totalorder %s33, %s49
      %p51 = scmp.eq.s32.totalorder %s25, 0
      %p52 = por %p50, %p51
      %s53 = ssub.s32 %s19, %s26
      %p54 = scmp.eq.s32.totalorder %s53, 0
      %s56 = sadd.s32 %s55, 1
      %s57 = scalar_select %p54, %s55, %s56
      %p60 = pneg %p54
      %p61 = scmp.eq.s32.totalorder %s19, 3
      %p62 = por %p60, %p61
      %p63 = scmp.ne.s32.totalorder %s55, %s58
      %p64 = scmp.eq.s32.totalorder %s19, 0
      %p65 = por %p63, %p64
      %p66 = scmp.ne.s32.totalorder %s55, %s58
      %p67 = scmp.eq.s32.totalorder %s24, 3
      %p68 = por %p66, %p67
      %p69 = scmp.ne.s32.totalorder %s58, %s59
      %p70 = scmp.eq.s32.totalorder %s24, 0
      %p71 = por %p69, %p70
      %p72 = scmp.ne.s32.totalorder %s58, %s59
      %p73 = scmp.eq.s32.totalorder %s25, 3
      %p74 = por %p72, %p73
      %p76 = scmp.ne.s32.totalorder %s59, %s75
      %p77 = scmp.eq.s32.totalorder %s25, 0
      %p78 = por %p76, %p77
      %s79 = ssub.s32 %s19, %s26
      %p80 = scmp.eq.s32.totalorder %s79, 0
      %s82 = sadd.s32 %s81, 1
      %s83 = scalar_select %p80, %s81, %s82
      %p86 = pneg %p80
      %p87 = scmp.eq.s32.totalorder %s19, 3
      %p88 = por %p86, %p87
      %p89 = scmp.ne.s32.totalorder %s81, %s84
      %p90 = scmp.eq.s32.totalorder %s19, 0
      %p91 = por %p89, %p90
      %p92 = scmp.ne.s32.totalorder %s81, %s84
      %p93 = scmp.eq.s32.totalorder %s24, 3
      %p94 = por %p92, %p93
      %p95 = scmp.ne.s32.totalorder %s84, %s85
      %p96 = scmp.eq.s32.totalorder %s24, 0
      %p97 = por %p95, %p96
      %p98 = scmp.ne.s32.totalorder %s84, %s85
      %p99 = scmp.eq.s32.totalorder %s25, 3
      %p100 = por %p98, %p99
      %p102 = scmp.ne.s32.totalorder %s85, %s101
      %p103 = scmp.eq.s32.totalorder %s25, 0
      %p104 = por %p102, %p103
      %s105 = ssub.s32 %s19, %s26
      %p106 = scmp.eq.s32.totalorder %s105, 0
      %s108 = sadd.s32 %s107, 1
      %s109 = scalar_select %p106, %s107, %s108
      %p112 = pneg %p106
      %p113 = scmp.eq.s32.totalorder %s19, 3
      %p114 = por %p112, %p113
      %p115 = scmp.ne.s32.totalorder %s107, %s110
      %p116 = scmp.eq.s32.totalorder %s19, 0
      %p117 = por %p115, %p116
      %p118 = scmp.ne.s32.totalorder %s107, %s110
      %p119 = scmp.eq.s32.totalorder %s24, 3
      %p120 = por %p118, %p119
      %p121 = scmp.ne.s32.totalorder %s110, %s111
      %p122 = scmp.eq.s32.totalorder %s24, 0
      %p123 = por %p121, %p122
      %p124 = scmp.ne.s32.totalorder %s110, %s111
      %p125 = scmp.eq.s32.totalorder %s25, 3
      %p126 = por %p124, %p125
      %p128 = scmp.ne.s32.totalorder %s111, %s127
      %p129 = scmp.eq.s32.totalorder %s25, 0
      %p130 = por %p128, %p129
      %s131 = ssub.s32 %s19, %s26
      %p132 = scmp.eq.s32.totalorder %s131, 0
      %s134 = sadd.s32 %s133, 1
      %s135 = scalar_select %p132, %s133, %s134
      %p138 = pneg %p132
      %p139 = scmp.eq.s32.totalorder %s19, 3
      %p140 = por %p138, %p139
      %p141 = scmp.ne.s32.totalorder %s133, %s136
      %p142 = scmp.eq.s32.totalorder %s19, 0
      %p143 = por %p141, %p142
      %p144 = scmp.ne.s32.totalorder %s133, %s136
      %p145 = scmp.eq.s32.totalorder %s24, 3
      %p146 = por %p144, %p145
      %p147 = scmp.ne.s32.totalorder %s136, %s137
      %p148 = scmp.eq.s32.totalorder %s24, 0
      %p149 = por %p147, %p148
      %p150 = scmp.ne.s32.totalorder %s136, %s137
      %p151 = scmp.eq.s32.totalorder %s25, 3
      %p152 = por %p150, %p151
      %p154 = scmp.ne.s32.totalorder %s137, %s153
      %p155 = scmp.eq.s32.totalorder %s25, 0
      %p156 = por %p154, %p155
      %p157 = scmp.le.s32.totalorder 1, %s19
      %p158 = scmp.lt.s32.totalorder %s19, 5
      %p159 = pnand %p157, %p158
      %p160 = pneg %p159
      // Predicated region
      $region9: #{tpu_custom_call.1} parent=5 // pred_check
        _
      $region10: #{tpu_custom_call.1} parent=5 // pred_check_branch
        %162 = sbr.rel (%p159) target = $region12
      $region11: #{tpu_custom_call.1} parent=5 // pred_region
        %s163 = ssub.s32 %s19, 1
      $region12: #{tpu_custom_call.1} parent=5 // pred_fallthru
        _
      %p164 = scmp.lt.s32.totalorder %s19, 4
      // Predicated region
      $region13: #{tpu_custom_call.1} parent=5 // pred_check
        %p165 = pneg %p164
      $region14: #{tpu_custom_call.1} parent=5 // pred_check_branch
        %167 = sbr.rel (%p165) target = $region16
      $region15: #{tpu_custom_call.1} parent=5 // pred_region
        // Predicated region
        $region17: #{tpu_custom_call.1} parent=15 // pred_check
          %p168 = pneg %p39
        $region18: #{tpu_custom_call.1} parent=15 // pred_check_branch
          %170 = sbr.rel (%p168) target = $region20
        $region19: #{tpu_custom_call.1} parent=15 // pred_region
          %p171 = scmp.lt.s32.totalorder %s19, 3
          %s172 = scalar_select %p171, %s19, 3
          %s173 = smul.addr %s172, 128
          %s174 = smul.addr %s173, 4
          %s175 = scalar_lea.vmem %s0, %s174
        $region20: #{tpu_custom_call.1} parent=15 // pred_fallthru
          _
        // Predicated region
        $region21: #{tpu_custom_call.1} parent=15 // pred_check
          %p176 = pneg %p65
        $region22: #{tpu_custom_call.1} parent=15 // pred_check_branch
          %178 = sbr.rel (%p176) target = $region24
        $region23: #{tpu_custom_call.1} parent=15 // pred_region
          %s179 = sand.u32 %s55, 1
          %s180 = scalar_lea.sflag [#allocation3], %s179
          %s181 = sand.u32 %s55, 1
          %s182 = smul.addr %s181, 8
          %s183 = scalar_lea.vmem [#allocation2], %s182
          %s185 = ssub.s32 128, 128
          %186 = vsyncadd %s180, %s185
          %s187 = smul.addr %s19, 2
          %s188 = smul.addr %s187, 64
          %s189 = scalar_lea.hbm %s1, %s188
          %s190 = sshll.u32 %s183, 4
          %s191 = int_to_ptr.vmem [resolvable:$true] %s190
          %196 = dma.hbm_to_vmem [thread:$0]  %s189, 128, %s191, %s180, 64, 64, 4
        $region24: #{tpu_custom_call.1} parent=15 // pred_fallthru
          _
        // Predicated region
        $region25: #{tpu_custom_call.1} parent=15 // pred_check
          %p197 = pneg %p91
        $region26: #{tpu_custom_call.1} parent=15 // pred_check_branch
          %199 = sbr.rel (%p197) target = $region28
        $region27: #{tpu_custom_call.1} parent=15 // pred_region
          %s200 = sand.u32 %s19, 1
          %s201 = scalar_lea.sflag [#allocation6], %s200
          %s202 = sand.u32 %s81, 1
          %s203 = scalar_lea.vmem [#allocation5], %s202
          %s205 = ssub.s32 16, 16
          %206 = vsyncadd %s201, %s205
          %s207 = smul.addr %s19, 16
          %s208 = scalar_lea.hbm %s2, %s207
          %s210 = sshll.u32 %s203, 4
          %s211 = int_to_ptr.vmem [resolvable:$true] %s210
          %213 = dma.hbm_to_vmem [thread:$0]  %s208, 16, %s211, %s201
        $region28: #{tpu_custom_call.1} parent=15 // pred_fallthru
          _
        // Predicated region
        $region29: #{tpu_custom_call.1} parent=15 // pred_check
          %p214 = pneg %p117
        $region30: #{tpu_custom_call.1} parent=15 // pred_check_branch
          %216 = sbr.rel (%p214) target = $region32
        $region31: #{tpu_custom_call.1} parent=15 // pred_region
          %s217 = sand.u32 %s19, 1
          %s218 = scalar_lea.sflag [#allocation6], %s217
          %s219 = sand.u32 %s107, 1
          %s220 = scalar_lea.vmem [#allocation7], %s219
          %s222 = ssub.s32 16, 16
          %223 = vsyncadd %s218, %s222
          %s224 = smul.addr %s19, 16
          %s225 = scalar_lea.hbm %s3, %s224
          %s227 = sshll.u32 %s220, 4
          %s228 = int_to_ptr.vmem [resolvable:$true] %s227
          %230 = dma.hbm_to_vmem [thread:$0]  %s225, 16, %s228, %s218
        $region32: #{tpu_custom_call.1} parent=15 // pred_fallthru
          _
      $region16: #{tpu_custom_call.1} parent=5 // pred_fallthru
        _
      %p231 = scmp.le.s32.totalorder 1, %s19
      %p232 = scmp.lt.s32.totalorder %s19, 5
      %p233 = pnand %p231, %p232
      %p234 = pneg %p233
      // Predicated region
      $region33: #{tpu_custom_call.1} parent=5 // pred_check
        _
      $region34: #{tpu_custom_call.1} parent=5 // pred_check_branch
        %236 = sbr.rel (%p233) target = $region36
      $region35: #{tpu_custom_call.1} parent=5 // pred_region
        %s237 = ssub.s32 %s19, 1
        %s238 = sand.u32 %s58, 1
        %s239 = scalar_lea.sflag [#allocation3], %s238
        %s240 = sand.u32 %s58, 1
        %s241 = smul.addr %s240, 8
        %s242 = scalar_lea.vmem [#allocation2], %s241
        // Predicated region
        $region37: #{tpu_custom_call.1} parent=35 // pred_check
          %p243 = pneg %p71
        $region38: #{tpu_custom_call.1} parent=35 // pred_check_branch
          %245 = sbr.rel (%p243) target = $region40
        $region39: #{tpu_custom_call.1} parent=35 // pred_region
          %246 = dma.done %s239, 128
        $region40: #{tpu_custom_call.1} parent=35 // pred_fallthru
          _
        %s247 = sand.u32 %s24, 1
        %s248 = scalar_lea.sflag [#allocation6], %s247
        %s249 = sand.u32 %s84, 1
        %s250 = scalar_lea.vmem [#allocation5], %s249
        // Predicated region
        $region41: #{tpu_custom_call.1} parent=35 // pred_check
          %p251 = pneg %p97
        $region42: #{tpu_custom_call.1} parent=35 // pred_check_branch
          %253 = sbr.rel (%p251) target = $region44
        $region43: #{tpu_custom_call.1} parent=35 // pred_region
          %254 = dma.done %s248, 16
        $region44: #{tpu_custom_call.1} parent=35 // pred_fallthru
          _
        %s255 = sand.u32 %s24, 1
        %s256 = scalar_lea.sflag [#allocation6], %s255
        %s257 = sand.u32 %s110, 1
        %s258 = scalar_lea.vmem [#allocation7], %s257
        // Predicated region
        $region45: #{tpu_custom_call.1} parent=35 // pred_check
          %p259 = pneg %p123
        $region46: #{tpu_custom_call.1} parent=35 // pred_check_branch
          %261 = sbr.rel (%p259) target = $region48
        $region47: #{tpu_custom_call.1} parent=35 // pred_region
          %262 = dma.done %s256, 16
        $region48: #{tpu_custom_call.1} parent=35 // pred_fallthru
          _
        %p263 = scmp.lt.s32.totalorder %s24, 3
        %s264 = scalar_select %p263, %s24, 3
        %s265 = smul.addr %s264, 128
        %s266 = smul.addr %s265, 4
        %s267 = scalar_lea.vmem %s0, %s266
        %p268 = pneg %p45
        %p269 = pneg %p42
        %s270 = sand.u32 %s58, 1
        %s271 = scalar_lea.sflag [#allocation3], %s270
        %s272 = sand.u32 %s58, 1
        %s273 = smul.addr %s272, 8
        %s274 = scalar_lea.vmem [#allocation2], %s273
        %p275 = pneg %p71
        %p276 = pneg %p68
        %s277 = sand.u32 %s24, 1
        %s278 = scalar_lea.sflag [#allocation6], %s277
        %s279 = sand.u32 %s84, 1
        %s280 = scalar_lea.vmem [#allocation5], %s279
        %p281 = pneg %p97
        %p282 = pneg %p94
        %s283 = sand.u32 %s24, 1
        %s284 = scalar_lea.sflag [#allocation6], %s283
        %s285 = sand.u32 %s110, 1
        %s286 = scalar_lea.vmem [#allocation7], %s285
        %p287 = pneg %p123
        %p288 = pneg %p120
        %p289 = pneg %p149
        %p290 = pneg %p146
        %s291 = sand.u32 %s136, 1
        %s292 = scalar_lea.sflag [#allocation4], %s291
        %s293 = sand.u32 %s136, 1
        %s294 = smul.addr %s293, 1024
        %s295 = scalar_lea.vmem [#allocation8], %s294
        %p296 = scmp.lt.s32.totalorder %s24, 3
        %s297 = scalar_select %p296, %s24, 3
        %s298 = smul.addr %s297, 128
        %s299 = smul.addr %s298, 4
        %s300 = scalar_lea.vmem %s0, %s299
        %v302 = vld [vmem:[%s300] sm:$0xf]
        %v303 = vld [vmem:[%s300 + $0x4] sm:$0xf]
        %v304 = vld [vmem:[%s300 + $0x8] sm:$0xf]
        %v305 = vld [vmem:[%s300 + $0xc] sm:$0xf]
        %v306 = vld [vmem:[%s300 + $0x10] sm:$0xf]
        %v307 = vld [vmem:[%s300 + $0x14] sm:$0xf]
        %v308 = vld [vmem:[%s300 + $0x18] sm:$0xf]
        %v309 = vld [vmem:[%s300 + $0x1c] sm:$0xf]
        %v310 = vld [vmem:[%s300 + $0x20] sm:$0xf]
        %v311 = vld [vmem:[%s300 + $0x24] sm:$0xf]
        %v312 = vld [vmem:[%s300 + $0x28] sm:$0xf]
        %v313 = vld [vmem:[%s300 + $0x2c] sm:$0xf]
        %v314 = vld [vmem:[%s300 + $0x30] sm:$0xf]
        %v315 = vld [vmem:[%s300 + $0x34] sm:$0xf]
        %v316 = vld [vmem:[%s300 + $0x38] sm:$0xf]
        %v317 = vld [vmem:[%s300 + $0x3c] sm:$0xf]
        %v318 = vld [vmem:[%s300 + $0x40] sm:$0xf]
        %v319 = vld [vmem:[%s300 + $0x44] sm:$0xf]
        %v320 = vld [vmem:[%s300 + $0x48] sm:$0xf]
        %v321 = vld [vmem:[%s300 + $0x4c] sm:$0xf]
        %v322 = vld [vmem:[%s300 + $0x50] sm:$0xf]
        %v323 = vld [vmem:[%s300 + $0x54] sm:$0xf]
        %v324 = vld [vmem:[%s300 + $0x58] sm:$0xf]
        %v325 = vld [vmem:[%s300 + $0x5c] sm:$0xf]
        %v326 = vld [vmem:[%s300 + $0x60] sm:$0xf]
        %v327 = vld [vmem:[%s300 + $0x64] sm:$0xf]
        %v328 = vld [vmem:[%s300 + $0x68] sm:$0xf]
        %v329 = vld [vmem:[%s300 + $0x6c] sm:$0xf]
        %v330 = vld [vmem:[%s300 + $0x70] sm:$0xf]
        %v331 = vld [vmem:[%s300 + $0x74] sm:$0xf]
        %v332 = vld [vmem:[%s300 + $0x78] sm:$0xf]
        %v333 = vld [vmem:[%s300 + $0x7c] sm:$0xf]
        %v334 = vld [vmem:[%s300 + $0x80] sm:$0xf]
        %v335 = vld [vmem:[%s300 + $0x84] sm:$0xf]
        %v336 = vld [vmem:[%s300 + $0x88] sm:$0xf]
        %v337 = vld [vmem:[%s300 + $0x8c] sm:$0xf]
        %v338 = vld [vmem:[%s300 + $0x90] sm:$0xf]
        %v339 = vld [vmem:[%s300 + $0x94] sm:$0xf]
        %v340 = vld [vmem:[%s300 + $0x98] sm:$0xf]
        %v341 = vld [vmem:[%s300 + $0x9c] sm:$0xf]
        %v342 = vld [vmem:[%s300 + $0xa0] sm:$0xf]
        %v343 = vld [vmem:[%s300 + $0xa4] sm:$0xf]
        %v344 = vld [vmem:[%s300 + $0xa8] sm:$0xf]
        %v345 = vld [vmem:[%s300 + $0xac] sm:$0xf]
        %v346 = vld [vmem:[%s300 + $0xb0] sm:$0xf]
        %v347 = vld [vmem:[%s300 + $0xb4] sm:$0xf]
        %v348 = vld [vmem:[%s300 + $0xb8] sm:$0xf]
        %v349 = vld [vmem:[%s300 + $0xbc] sm:$0xf]
        %v350 = vld [vmem:[%s300 + $0xc0] sm:$0xf]
        %v351 = vld [vmem:[%s300 + $0xc4] sm:$0xf]
        %v352 = vld [vmem:[%s300 + $0xc8] sm:$0xf]
        %v353 = vld [vmem:[%s300 + $0xcc] sm:$0xf]
        %v354 = vld [vmem:[%s300 + $0xd0] sm:$0xf]
        %v355 = vld [vmem:[%s300 + $0xd4] sm:$0xf]
        %v356 = vld [vmem:[%s300 + $0xd8] sm:$0xf]
        %v357 = vld [vmem:[%s300 + $0xdc] sm:$0xf]
        %v358 = vld [vmem:[%s300 + $0xe0] sm:$0xf]
        %v359 = vld [vmem:[%s300 + $0xe4] sm:$0xf]
        %v360 = vld [vmem:[%s300 + $0xe8] sm:$0xf]
        %v361 = vld [vmem:[%s300 + $0xec] sm:$0xf]
        %v362 = vld [vmem:[%s300 + $0xf0] sm:$0xf]
        %v363 = vld [vmem:[%s300 + $0xf4] sm:$0xf]
        %v364 = vld [vmem:[%s300 + $0xf8] sm:$0xf]
        %v365 = vld [vmem:[%s300 + $0xfc] sm:$0xf]
        %v366 = vld [vmem:[%s300 + $0x100] sm:$0xf]
        %v367 = vld [vmem:[%s300 + $0x104] sm:$0xf]
        %v368 = vld [vmem:[%s300 + $0x108] sm:$0xf]
        %v369 = vld [vmem:[%s300 + $0x10c] sm:$0xf]
        %v370 = vld [vmem:[%s300 + $0x110] sm:$0xf]
        %v371 = vld [vmem:[%s300 + $0x114] sm:$0xf]
        %v372 = vld [vmem:[%s300 + $0x118] sm:$0xf]
        %v373 = vld [vmem:[%s300 + $0x11c] sm:$0xf]
        %v374 = vld [vmem:[%s300 + $0x120] sm:$0xf]
        %v375 = vld [vmem:[%s300 + $0x124] sm:$0xf]
        %v376 = vld [vmem:[%s300 + $0x128] sm:$0xf]
        %v377 = vld [vmem:[%s300 + $0x12c] sm:$0xf]
        %v378 = vld [vmem:[%s300 + $0x130] sm:$0xf]
        %v379 = vld [vmem:[%s300 + $0x134] sm:$0xf]
        %v380 = vld [vmem:[%s300 + $0x138] sm:$0xf]
        %v381 = vld [vmem:[%s300 + $0x13c] sm:$0xf]
        %v382 = vld [vmem:[%s300 + $0x140] sm:$0xf]
        %v383 = vld [vmem:[%s300 + $0x144] sm:$0xf]
        %v384 = vld [vmem:[%s300 + $0x148] sm:$0xf]
        %v385 = vld [vmem:[%s300 + $0x14c] sm:$0xf]
        %v386 = vld [vmem:[%s300 + $0x150] sm:$0xf]
        %v387 = vld [vmem:[%s300 + $0x154] sm:$0xf]
        %v388 = vld [vmem:[%s300 + $0x158] sm:$0xf]
        %v389 = vld [vmem:[%s300 + $0x15c] sm:$0xf]
        %v390 = vld [vmem:[%s300 + $0x160] sm:$0xf]
        %v391 = vld [vmem:[%s300 + $0x164] sm:$0xf]
        %v392 = vld [vmem:[%s300 + $0x168] sm:$0xf]
        %v393 = vld [vmem:[%s300 + $0x16c] sm:$0xf]
        %v394 = vld [vmem:[%s300 + $0x170] sm:$0xf]
        %v395 = vld [vmem:[%s300 + $0x174] sm:$0xf]
        %v396 = vld [vmem:[%s300 + $0x178] sm:$0xf]
        %v397 = vld [vmem:[%s300 + $0x17c] sm:$0xf]
        %v398 = vld [vmem:[%s300 + $0x180] sm:$0xf]
        %v399 = vld [vmem:[%s300 + $0x184] sm:$0xf]
        %v400 = vld [vmem:[%s300 + $0x188] sm:$0xf]
        %v401 = vld [vmem:[%s300 + $0x18c] sm:$0xf]
        %v402 = vld [vmem:[%s300 + $0x190] sm:$0xf]
        %v403 = vld [vmem:[%s300 + $0x194] sm:$0xf]
        %v404 = vld [vmem:[%s300 + $0x198] sm:$0xf]
        %v405 = vld [vmem:[%s300 + $0x19c] sm:$0xf]
        %v406 = vld [vmem:[%s300 + $0x1a0] sm:$0xf]
        %v407 = vld [vmem:[%s300 + $0x1a4] sm:$0xf]
        %v408 = vld [vmem:[%s300 + $0x1a8] sm:$0xf]
        %v409 = vld [vmem:[%s300 + $0x1ac] sm:$0xf]
        %v410 = vld [vmem:[%s300 + $0x1b0] sm:$0xf]
        %v411 = vld [vmem:[%s300 + $0x1b4] sm:$0xf]
        %v412 = vld [vmem:[%s300 + $0x1b8] sm:$0xf]
        %v413 = vld [vmem:[%s300 + $0x1bc] sm:$0xf]
        %v414 = vld [vmem:[%s300 + $0x1c0] sm:$0xf]
        %v415 = vld [vmem:[%s300 + $0x1c4] sm:$0xf]
        %v416 = vld [vmem:[%s300 + $0x1c8] sm:$0xf]
        %v417 = vld [vmem:[%s300 + $0x1cc] sm:$0xf]
        %v418 = vld [vmem:[%s300 + $0x1d0] sm:$0xf]
        %v419 = vld [vmem:[%s300 + $0x1d4] sm:$0xf]
        %v420 = vld [vmem:[%s300 + $0x1d8] sm:$0xf]
        %v421 = vld [vmem:[%s300 + $0x1dc] sm:$0xf]
        %v422 = vld [vmem:[%s300 + $0x1e0] sm:$0xf]
        %v423 = vld [vmem:[%s300 + $0x1e4] sm:$0xf]
        %v424 = vld [vmem:[%s300 + $0x1e8] sm:$0xf]
        %v425 = vld [vmem:[%s300 + $0x1ec] sm:$0xf]
        %v426 = vld [vmem:[%s300 + $0x1f0] sm:$0xf]
        %v427 = vld [vmem:[%s300 + $0x1f4] sm:$0xf]
        %v428 = vld [vmem:[%s300 + $0x1f8] sm:$0xf]
        %v429 = vld [vmem:[%s300 + $0x1fc] sm:$0xf]
        %v430 = vld [vmem:[%s242] sm:$0xf]
        %v431 = vld [vmem:[%s242 + $0x4] sm:$0xf]
        %v560 = vunpack.c.l.b16 %v302
        %v561 = vunpack.c.l.b16 %v303
        %v562 = vunpack.c.l.b16 %v304
        %v563 = vunpack.c.l.b16 %v305
        %v564 = vunpack.c.l.b16 %v306
        %v565 = vunpack.c.l.b16 %v307
        %v566 = vunpack.c.l.b16 %v308
        %v567 = vunpack.c.l.b16 %v309
        %v568 = vunpack.c.l.b16 %v310
        %v569 = vunpack.c.l.b16 %v311
        %v570 = vunpack.c.l.b16 %v312
        %v571 = vunpack.c.l.b16 %v313
        %v572 = vunpack.c.l.b16 %v314
        %v573 = vunpack.c.l.b16 %v315
        %v574 = vunpack.c.l.b16 %v316
        %v575 = vunpack.c.l.b16 %v317
        %v576 = vunpack.c.l.b16 %v318
        %v577 = vunpack.c.l.b16 %v319
        %v578 = vunpack.c.l.b16 %v320
        %v579 = vunpack.c.l.b16 %v321
        %v580 = vunpack.c.l.b16 %v322
        %v581 = vunpack.c.l.b16 %v323
        %v582 = vunpack.c.l.b16 %v324
        %v583 = vunpack.c.l.b16 %v325
        %v584 = vunpack.c.l.b16 %v326
        %v585 = vunpack.c.l.b16 %v327
        %v586 = vunpack.c.l.b16 %v328
        %v587 = vunpack.c.l.b16 %v329
        %v588 = vunpack.c.l.b16 %v330
        %v589 = vunpack.c.l.b16 %v331
        %v590 = vunpack.c.l.b16 %v332
        %v591 = vunpack.c.l.b16 %v333
        %v592 = vunpack.c.l.b16 %v334
        %v593 = vunpack.c.l.b16 %v335
        %v594 = vunpack.c.l.b16 %v336
        %v595 = vunpack.c.l.b16 %v337
        %v596 = vunpack.c.l.b16 %v338
        %v597 = vunpack.c.l.b16 %v339
        %v598 = vunpack.c.l.b16 %v340
        %v599 = vunpack.c.l.b16 %v341
        %v600 = vunpack.c.l.b16 %v342
        %v601 = vunpack.c.l.b16 %v343
        %v602 = vunpack.c.l.b16 %v344
        %v603 = vunpack.c.l.b16 %v345
        %v604 = vunpack.c.l.b16 %v346
        %v605 = vunpack.c.l.b16 %v347
        %v606 = vunpack.c.l.b16 %v348
        %v607 = vunpack.c.l.b16 %v349
        %v608 = vunpack.c.l.b16 %v350
        %v609 = vunpack.c.l.b16 %v351
        %v610 = vunpack.c.l.b16 %v352
        %v611 = vunpack.c.l.b16 %v353
        %v612 = vunpack.c.l.b16 %v354
        %v613 = vunpack.c.l.b16 %v355
        %v614 = vunpack.c.l.b16 %v356
        %v615 = vunpack.c.l.b16 %v357
        %v616 = vunpack.c.l.b16 %v358
        %v617 = vunpack.c.l.b16 %v359
        %v618 = vunpack.c.l.b16 %v360
        %v619 = vunpack.c.l.b16 %v361
        %v620 = vunpack.c.l.b16 %v362
        %v621 = vunpack.c.l.b16 %v363
        %v622 = vunpack.c.l.b16 %v364
        %v623 = vunpack.c.l.b16 %v365
        %v624 = vunpack.c.l.b16 %v366
        %v625 = vunpack.c.l.b16 %v367
        %v626 = vunpack.c.l.b16 %v368
        %v627 = vunpack.c.l.b16 %v369
        %v628 = vunpack.c.l.b16 %v370
        %v629 = vunpack.c.l.b16 %v371
        %v630 = vunpack.c.l.b16 %v372
        %v631 = vunpack.c.l.b16 %v373
        %v632 = vunpack.c.l.b16 %v374
        %v633 = vunpack.c.l.b16 %v375
        %v634 = vunpack.c.l.b16 %v376
        %v635 = vunpack.c.l.b16 %v377
        %v636 = vunpack.c.l.b16 %v378
        %v637 = vunpack.c.l.b16 %v379
        %v638 = vunpack.c.l.b16 %v380
        %v639 = vunpack.c.l.b16 %v381
        %v640 = vunpack.c.l.b16 %v382
        %v641 = vunpack.c.l.b16 %v383
        %v642 = vunpack.c.l.b16 %v384
        %v643 = vunpack.c.l.b16 %v385
        %v644 = vunpack.c.l.b16 %v386
        %v645 = vunpack.c.l.b16 %v387
        %v646 = vunpack.c.l.b16 %v388
        %v647 = vunpack.c.l.b16 %v389
        %v648 = vunpack.c.l.b16 %v390
        %v649 = vunpack.c.l.b16 %v391
        %v650 = vunpack.c.l.b16 %v392
        %v651 = vunpack.c.l.b16 %v393
        %v652 = vunpack.c.l.b16 %v394
        %v653 = vunpack.c.l.b16 %v395
        %v654 = vunpack.c.l.b16 %v396
        %v655 = vunpack.c.l.b16 %v397
        %v656 = vunpack.c.l.b16 %v398
        %v657 = vunpack.c.l.b16 %v399
        %v658 = vunpack.c.l.b16 %v400
        %v659 = vunpack.c.l.b16 %v401
        %v660 = vunpack.c.l.b16 %v402
        %v661 = vunpack.c.l.b16 %v403
        %v662 = vunpack.c.l.b16 %v404
        %v663 = vunpack.c.l.b16 %v405
        %v664 = vunpack.c.l.b16 %v406
        %v665 = vunpack.c.l.b16 %v407
        %v666 = vunpack.c.l.b16 %v408
        %v667 = vunpack.c.l.b16 %v409
        %v668 = vunpack.c.l.b16 %v410
        %v669 = vunpack.c.l.b16 %v411
        %v670 = vunpack.c.l.b16 %v412
        %v671 = vunpack.c.l.b16 %v413
        %v672 = vunpack.c.l.b16 %v414
        %v673 = vunpack.c.l.b16 %v415
        %v674 = vunpack.c.l.b16 %v416
        %v675 = vunpack.c.l.b16 %v417
        %v676 = vunpack.c.l.b16 %v418
        %v677 = vunpack.c.l.b16 %v419
        %v678 = vunpack.c.l.b16 %v420
        %v679 = vunpack.c.l.b16 %v421
        %v680 = vunpack.c.l.b16 %v422
        %v681 = vunpack.c.l.b16 %v423
        %v682 = vunpack.c.l.b16 %v424
        %v683 = vunpack.c.l.b16 %v425
        %v684 = vunpack.c.l.b16 %v426
        %v685 = vunpack.c.l.b16 %v427
        %v686 = vunpack.c.l.b16 %v428
        %v687 = vunpack.c.l.b16 %v429
        %v688 = vpack.c.b16 %v561, %v560
        %v689 = vpack.c.b16 %v563, %v562
        %v690 = vpack.c.b16 %v565, %v564
        %v691 = vpack.c.b16 %v567, %v566
        %v692 = vpack.c.b16 %v569, %v568
        %v693 = vpack.c.b16 %v571, %v570
        %v694 = vpack.c.b16 %v573, %v572
        %v695 = vpack.c.b16 %v575, %v574
        %v696 = vpack.c.b16 %v577, %v576
        %v697 = vpack.c.b16 %v579, %v578
        %v698 = vpack.c.b16 %v581, %v580
        %v699 = vpack.c.b16 %v583, %v582
        %v700 = vpack.c.b16 %v585, %v584
        %v701 = vpack.c.b16 %v587, %v586
        %v702 = vpack.c.b16 %v589, %v588
        %v703 = vpack.c.b16 %v591, %v590
        %v704 = vpack.c.b16 %v593, %v592
        %v705 = vpack.c.b16 %v595, %v594
        %v706 = vpack.c.b16 %v597, %v596
        %v707 = vpack.c.b16 %v599, %v598
        %v708 = vpack.c.b16 %v601, %v600
        %v709 = vpack.c.b16 %v603, %v602
        %v710 = vpack.c.b16 %v605, %v604
        %v711 = vpack.c.b16 %v607, %v606
        %v712 = vpack.c.b16 %v609, %v608
        %v713 = vpack.c.b16 %v611, %v610
        %v714 = vpack.c.b16 %v613, %v612
        %v715 = vpack.c.b16 %v615, %v614
        %v716 = vpack.c.b16 %v617, %v616
        %v717 = vpack.c.b16 %v619, %v618
        %v718 = vpack.c.b16 %v621, %v620
        %v719 = vpack.c.b16 %v623, %v622
        %v720 = vpack.c.b16 %v625, %v624
        %v721 = vpack.c.b16 %v627, %v626
        %v722 = vpack.c.b16 %v629, %v628
        %v723 = vpack.c.b16 %v631, %v630
        %v724 = vpack.c.b16 %v633, %v632
        %v725 = vpack.c.b16 %v635, %v634
        %v726 = vpack.c.b16 %v637, %v636
        %v727 = vpack.c.b16 %v639, %v638
        %v728 = vpack.c.b16 %v641, %v640
        %v729 = vpack.c.b16 %v643, %v642
        %v730 = vpack.c.b16 %v645, %v644
        %v731 = vpack.c.b16 %v647, %v646
        %v732 = vpack.c.b16 %v649, %v648
        %v733 = vpack.c.b16 %v651, %v650
        %v734 = vpack.c.b16 %v653, %v652
        %v735 = vpack.c.b16 %v655, %v654
        %v736 = vpack.c.b16 %v657, %v656
        %v737 = vpack.c.b16 %v659, %v658
        %v738 = vpack.c.b16 %v661, %v660
        %v739 = vpack.c.b16 %v663, %v662
        %v740 = vpack.c.b16 %v665, %v664
        %v741 = vpack.c.b16 %v667, %v666
        %v742 = vpack.c.b16 %v669, %v668
        %v743 = vpack.c.b16 %v671, %v670
        %v744 = vpack.c.b16 %v673, %v672
        %v745 = vpack.c.b16 %v675, %v674
        %v746 = vpack.c.b16 %v677, %v676
        %v747 = vpack.c.b16 %v679, %v678
        %v748 = vpack.c.b16 %v681, %v680
        %v749 = vpack.c.b16 %v683, %v682
        %v750 = vpack.c.b16 %v685, %v684
        %v751 = vpack.c.b16 %v687, %v686
        %v754 = vunpack.c.l.b16 %v430
        %v755 = vunpack.c.l.b16 %v431
        %v756 = vpack.c.b16 %v755, %v754
        %vm758 = vcmask 130048
        %v760 = vsel %vm758, %v688, 0
        %v763 = vsel %vm758, %v689, 0
        %v766 = vsel %vm758, %v690, 0
        %v769 = vsel %vm758, %v691, 0
        %v772 = vsel %vm758, %v692, 0
        %v775 = vsel %vm758, %v693, 0
        %v778 = vsel %vm758, %v694, 0
        %v781 = vsel %vm758, %v695, 0
        %v784 = vsel %vm758, %v696, 0
        %v787 = vsel %vm758, %v697, 0
        %v790 = vsel %vm758, %v698, 0
        %v793 = vsel %vm758, %v699, 0
        %v796 = vsel %vm758, %v700, 0
        %v799 = vsel %vm758, %v701, 0
        %v802 = vsel %vm758, %v702, 0
        %v805 = vsel %vm758, %v703, 0
        %v808 = vsel %vm758, %v704, 0
        %v811 = vsel %vm758, %v705, 0
        %v814 = vsel %vm758, %v706, 0
        %v817 = vsel %vm758, %v707, 0
        %v820 = vsel %vm758, %v708, 0
        %v823 = vsel %vm758, %v709, 0
        %v826 = vsel %vm758, %v710, 0
        %v829 = vsel %vm758, %v711, 0
        %v832 = vsel %vm758, %v712, 0
        %v835 = vsel %vm758, %v713, 0
        %v838 = vsel %vm758, %v714, 0
        %v841 = vsel %vm758, %v715, 0
        %v844 = vsel %vm758, %v716, 0
        %v847 = vsel %vm758, %v717, 0
        %v850 = vsel %vm758, %v718, 0
        %v853 = vsel %vm758, %v719, 0
        %v856 = vsel %vm758, %v720, 0
        %v859 = vsel %vm758, %v721, 0
        %v862 = vsel %vm758, %v722, 0
        %v865 = vsel %vm758, %v723, 0
        %v868 = vsel %vm758, %v724, 0
        %v871 = vsel %vm758, %v725, 0
        %v874 = vsel %vm758, %v726, 0
        %v877 = vsel %vm758, %v727, 0
        %v880 = vsel %vm758, %v728, 0
        %v883 = vsel %vm758, %v729, 0
        %v886 = vsel %vm758, %v730, 0
        %v889 = vsel %vm758, %v731, 0
        %v892 = vsel %vm758, %v732, 0
        %v895 = vsel %vm758, %v733, 0
        %v898 = vsel %vm758, %v734, 0
        %v901 = vsel %vm758, %v735, 0
        %v904 = vsel %vm758, %v736, 0
        %v907 = vsel %vm758, %v737, 0
        %v910 = vsel %vm758, %v738, 0
        %v913 = vsel %vm758, %v739, 0
        %v916 = vsel %vm758, %v740, 0
        %v919 = vsel %vm758, %v741, 0
        %v922 = vsel %vm758, %v742, 0
        %v925 = vsel %vm758, %v743, 0
        %v928 = vsel %vm758, %v744, 0
        %v931 = vsel %vm758, %v745, 0
        %v934 = vsel %vm758, %v746, 0
        %v937 = vsel %vm758, %v747, 0
        %v940 = vsel %vm758, %v748, 0
        %v943 = vsel %vm758, %v749, 0
        %v946 = vsel %vm758, %v750, 0
        %v949 = vsel %vm758, %v751, 0
        %951 = vmatprep.subr.bf16.mxu0 0
        %952 = vmatpush1.bf16.msra.mxu0 0
        %953 = vmatprep.subr.bf16.mxu0 0
        %954 = vmatpush1.bf16.msra.mxu0 0
        %955 = vmatprep.subr.bf16.mxu0 0
        %956 = vmatpush1.bf16.msra.mxu0 0
        %957 = vmatprep.subr.bf16.mxu0 0
        %958 = vmatpush1.bf16.msra.mxu0 0
        %959 = vmatprep.subr.bf16.mxu0 0
        %960 = vmatpush1.bf16.msra.mxu0 0
        %961 = vmatprep.subr.bf16.mxu0 0
        %962 = vmatpush1.bf16.msra.mxu0 0
        %963 = vmatprep.subr.bf16.mxu0 0
        %964 = vmatpush1.bf16.msra.mxu0 0
        %965 = vmatprep.subr.bf16.mxu0 0
        %966 = vmatpush1.bf16.msra.mxu0 %v756
        %967 = vmatprep.subr.bf16.mxu0 0
        %968 = vmatpush2.bf16.msra.mxu0 0
        %969 = vmatprep.subr.bf16.mxu0 0
        %970 = vmatpush2.bf16.msra.mxu0 0
        %971 = vmatprep.subr.bf16.mxu0 0
        %972 = vmatpush2.bf16.msra.mxu0 0
        %973 = vmatprep.subr.bf16.mxu0 0
        %974 = vmatpush2.bf16.msra.mxu0 0
        %975 = vmatprep.subr.bf16.mxu0 0
        %976 = vmatpush2.bf16.msra.mxu0 0
        %977 = vmatprep.subr.bf16.mxu0 0
        %978 = vmatpush2.bf16.msra.mxu0 0
        %979 = vmatprep.subr.bf16.mxu0 0
        %980 = vmatpush2.bf16.msra.mxu0 0
        %981 = vmatprep.subr.bf16.mxu0 0
        %982 = vmatpush2.bf16.msra.mxu0 0
        %983 = vmatprep.mubr.bf16.mxu0 0
        %984 = vmatmul.mubr.bf16.gmra.mxu0 %v760
        %v985 = vpop.f32.mrf.mxu0
        %v986 = vadd.f32 0.0, %v985
        %v987 = vpop.f32.mrf.mxu0
        %v988 = vpop.f32.mrf.mxu0
        %v989 = vadd.f32 0.0, %v988
        %v990 = vpop.f32.mrf.mxu0
        %991 = vmatprep.mubr.bf16.mxu0 0
        %992 = vmatmul.mubr.bf16.gmra.mxu0 %v763
        %v993 = vpop.f32.mrf.mxu0
        %v994 = vadd.f32 0.0, %v993
        %v995 = vpop.f32.mrf.mxu0
        %v996 = vpop.f32.mrf.mxu0
        %v997 = vadd.f32 0.0, %v996
        %v998 = vpop.f32.mrf.mxu0
        %999 = vmatprep.mubr.bf16.mxu0 0
        %1000 = vmatmul.mubr.bf16.gmra.mxu0 %v766
        %v1001 = vpop.f32.mrf.mxu0
        %v1002 = vadd.f32 0.0, %v1001
        %v1003 = vpop.f32.mrf.mxu0
        %v1004 = vpop.f32.mrf.mxu0
        %v1005 = vadd.f32 0.0, %v1004
        %v1006 = vpop.f32.mrf.mxu0
        %1007 = vmatprep.mubr.bf16.mxu0 0
        %1008 = vmatmul.mubr.bf16.gmra.mxu0 %v769
        %v1009 = vpop.f32.mrf.mxu0
        %v1010 = vadd.f32 0.0, %v1009
        %v1011 = vpop.f32.mrf.mxu0
        %v1012 = vpop.f32.mrf.mxu0
        %v1013 = vadd.f32 0.0, %v1012
        %v1014 = vpop.f32.mrf.mxu0
        %1015 = vmatprep.mubr.bf16.mxu0 0
        %1016 = vmatmul.mubr.bf16.gmra.mxu0 %v772
        %v1017 = vpop.f32.mrf.mxu0
        %v1018 = vadd.f32 0.0, %v1017
        %v1019 = vpop.f32.mrf.mxu0
        %v1020 = vpop.f32.mrf.mxu0
        %v1021 = vadd.f32 0.0, %v1020
        %v1022 = vpop.f32.mrf.mxu0
        %1023 = vmatprep.mubr.bf16.mxu0 0
        %1024 = vmatmul.mubr.bf16.gmra.mxu0 %v775
        %v1025 = vpop.f32.mrf.mxu0
        %v1026 = vadd.f32 0.0, %v1025
        %v1027 = vpop.f32.mrf.mxu0
        %v1028 = vpop.f32.mrf.mxu0
        %v1029 = vadd.f32 0.0, %v1028
        %v1030 = vpop.f32.mrf.mxu0
        %1031 = vmatprep.mubr.bf16.mxu0 0
        %1032 = vmatmul.mubr.bf16.gmra.mxu0 %v778
        %v1033 = vpop.f32.mrf.mxu0
        %v1034 = vadd.f32 0.0, %v1033
        %v1035 = vpop.f32.mrf.mxu0
        %v1036 = vpop.f32.mrf.mxu0
        %v1037 = vadd.f32 0.0, %v1036
        %v1038 = vpop.f32.mrf.mxu0
        %1039 = vmatprep.mubr.bf16.mxu0 0
        %1040 = vmatmul.mubr.bf16.gmra.mxu0 %v781
        %v1041 = vpop.f32.mrf.mxu0
        %v1042 = vadd.f32 0.0, %v1041
        %v1043 = vpop.f32.mrf.mxu0
        %v1044 = vpop.f32.mrf.mxu0
        %v1045 = vadd.f32 0.0, %v1044
        %v1046 = vpop.f32.mrf.mxu0
        %1047 = vmatprep.mubr.bf16.mxu0 0
        %1048 = vmatmul.mubr.bf16.gmra.mxu0 %v784
        %v1049 = vpop.f32.mrf.mxu0
        %v1050 = vadd.f32 0.0, %v1049
        %v1051 = vpop.f32.mrf.mxu0
        %v1052 = vpop.f32.mrf.mxu0
        %v1053 = vadd.f32 0.0, %v1052
        %v1054 = vpop.f32.mrf.mxu0
        %1055 = vmatprep.mubr.bf16.mxu0 0
        %1056 = vmatmul.mubr.bf16.gmra.mxu0 %v787
        %v1057 = vpop.f32.mrf.mxu0
        %v1058 = vadd.f32 0.0, %v1057
        %v1059 = vpop.f32.mrf.mxu0
        %v1060 = vpop.f32.mrf.mxu0
        %v1061 = vadd.f32 0.0, %v1060
        %v1062 = vpop.f32.mrf.mxu0
        %1063 = vmatprep.mubr.bf16.mxu0 0
        %1064 = vmatmul.mubr.bf16.gmra.mxu0 %v790
        %v1065 = vpop.f32.mrf.mxu0
        %v1066 = vadd.f32 0.0, %v1065
        %v1067 = vpop.f32.mrf.mxu0
        %v1068 = vpop.f32.mrf.mxu0
        %v1069 = vadd.f32 0.0, %v1068
        %v1070 = vpop.f32.mrf.mxu0
        %1071 = vmatprep.mubr.bf16.mxu0 0
        %1072 = vmatmul.mubr.bf16.gmra.mxu0 %v793
        %v1073 = vpop.f32.mrf.mxu0
        %v1074 = vadd.f32 0.0, %v1073
        %v1075 = vpop.f32.mrf.mxu0
        %v1076 = vpop.f32.mrf.mxu0
        %v1077 = vadd.f32 0.0, %v1076
        %v1078 = vpop.f32.mrf.mxu0
        %1079 = vmatprep.mubr.bf16.mxu0 0
        %1080 = vmatmul.mubr.bf16.gmra.mxu0 %v796
        %v1081 = vpop.f32.mrf.mxu0
        %v1082 = vadd.f32 0.0, %v1081
        %v1083 = vpop.f32.mrf.mxu0
        %v1084 = vpop.f32.mrf.mxu0
        %v1085 = vadd.f32 0.0, %v1084
        %v1086 = vpop.f32.mrf.mxu0
        %1087 = vmatprep.mubr.bf16.mxu0 0
        %1088 = vmatmul.mubr.bf16.gmra.mxu0 %v799
        %v1089 = vpop.f32.mrf.mxu0
        %v1090 = vadd.f32 0.0, %v1089
        %v1091 = vpop.f32.mrf.mxu0
        %v1092 = vpop.f32.mrf.mxu0
        %v1093 = vadd.f32 0.0, %v1092
        %v1094 = vpop.f32.mrf.mxu0
        %1095 = vmatprep.mubr.bf16.mxu0 0
        %1096 = vmatmul.mubr.bf16.gmra.mxu0 %v802
        %v1097 = vpop.f32.mrf.mxu0
        %v1098 = vadd.f32 0.0, %v1097
        %v1099 = vpop.f32.mrf.mxu0
        %v1100 = vpop.f32.mrf.mxu0
        %v1101 = vadd.f32 0.0, %v1100
        %v1102 = vpop.f32.mrf.mxu0
        %1103 = vmatprep.mubr.bf16.mxu0 0
        %1104 = vmatmul.mubr.bf16.gmra.mxu0 %v805
        %v1105 = vpop.f32.mrf.mxu0
        %v1106 = vadd.f32 0.0, %v1105
        %v1107 = vpop.f32.mrf.mxu0
        %v1108 = vpop.f32.mrf.mxu0
        %v1109 = vadd.f32 0.0, %v1108
        %v1110 = vpop.f32.mrf.mxu0
        %1111 = vmatprep.mubr.bf16.mxu0 0
        %1112 = vmatmul.mubr.bf16.gmra.mxu0 %v808
        %v1113 = vpop.f32.mrf.mxu0
        %v1114 = vadd.f32 0.0, %v1113
        %v1115 = vpop.f32.mrf.mxu0
        %v1116 = vpop.f32.mrf.mxu0
        %v1117 = vadd.f32 0.0, %v1116
        %v1118 = vpop.f32.mrf.mxu0
        %1119 = vmatprep.mubr.bf16.mxu0 0
        %1120 = vmatmul.mubr.bf16.gmra.mxu0 %v811
        %v1121 = vpop.f32.mrf.mxu0
        %v1122 = vadd.f32 0.0, %v1121
        %v1123 = vpop.f32.mrf.mxu0
        %v1124 = vpop.f32.mrf.mxu0
        %v1125 = vadd.f32 0.0, %v1124
        %v1126 = vpop.f32.mrf.mxu0
        %1127 = vmatprep.mubr.bf16.mxu0 0
        %1128 = vmatmul.mubr.bf16.gmra.mxu0 %v814
        %v1129 = vpop.f32.mrf.mxu0
        %v1130 = vadd.f32 0.0, %v1129
        %v1131 = vpop.f32.mrf.mxu0
        %v1132 = vpop.f32.mrf.mxu0
        %v1133 = vadd.f32 0.0, %v1132
        %v1134 = vpop.f32.mrf.mxu0
        %1135 = vmatprep.mubr.bf16.mxu0 0
        %1136 = vmatmul.mubr.bf16.gmra.mxu0 %v817
        %v1137 = vpop.f32.mrf.mxu0
        %v1138 = vadd.f32 0.0, %v1137
        %v1139 = vpop.f32.mrf.mxu0
        %v1140 = vpop.f32.mrf.mxu0
        %v1141 = vadd.f32 0.0, %v1140
        %v1142 = vpop.f32.mrf.mxu0
        %1143 = vmatprep.mubr.bf16.mxu0 0
        %1144 = vmatmul.mubr.bf16.gmra.mxu0 %v820
        %v1145 = vpop.f32.mrf.mxu0
        %v1146 = vadd.f32 0.0, %v1145
        %v1147 = vpop.f32.mrf.mxu0
        %v1148 = vpop.f32.mrf.mxu0
        %v1149 = vadd.f32 0.0, %v1148
        %v1150 = vpop.f32.mrf.mxu0
        %1151 = vmatprep.mubr.bf16.mxu0 0
        %1152 = vmatmul.mubr.bf16.gmra.mxu0 %v823
        %v1153 = vpop.f32.mrf.mxu0
        %v1154 = vadd.f32 0.0, %v1153
        %v1155 = vpop.f32.mrf.mxu0
        %v1156 = vpop.f32.mrf.mxu0
        %v1157 = vadd.f32 0.0, %v1156
        %v1158 = vpop.f32.mrf.mxu0
        %1159 = vmatprep.mubr.bf16.mxu0 0
        %1160 = vmatmul.mubr.bf16.gmra.mxu0 %v826
        %v1161 = vpop.f32.mrf.mxu0
        %v1162 = vadd.f32 0.0, %v1161
        %v1163 = vpop.f32.mrf.mxu0
        %v1164 = vpop.f32.mrf.mxu0
        %v1165 = vadd.f32 0.0, %v1164
        %v1166 = vpop.f32.mrf.mxu0
        %1167 = vmatprep.mubr.bf16.mxu0 0
        %1168 = vmatmul.mubr.bf16.gmra.mxu0 %v829
        %v1169 = vpop.f32.mrf.mxu0
        %v1170 = vadd.f32 0.0, %v1169
        %v1171 = vpop.f32.mrf.mxu0
        %v1172 = vpop.f32.mrf.mxu0
        %v1173 = vadd.f32 0.0, %v1172
        %v1174 = vpop.f32.mrf.mxu0
        %1175 = vmatprep.mubr.bf16.mxu0 0
        %1176 = vmatmul.mubr.bf16.gmra.mxu0 %v832
        %v1177 = vpop.f32.mrf.mxu0
        %v1178 = vadd.f32 0.0, %v1177
        %v1179 = vpop.f32.mrf.mxu0
        %v1180 = vpop.f32.mrf.mxu0
        %v1181 = vadd.f32 0.0, %v1180
        %v1182 = vpop.f32.mrf.mxu0
        %1183 = vmatprep.mubr.bf16.mxu0 0
        %1184 = vmatmul.mubr.bf16.gmra.mxu0 %v835
        %v1185 = vpop.f32.mrf.mxu0
        %v1186 = vadd.f32 0.0, %v1185
        %v1187 = vpop.f32.mrf.mxu0
        %v1188 = vpop.f32.mrf.mxu0
        %v1189 = vadd.f32 0.0, %v1188
        %v1190 = vpop.f32.mrf.mxu0
        %1191 = vmatprep.mubr.bf16.mxu0 0
        %1192 = vmatmul.mubr.bf16.gmra.mxu0 %v838
        %v1193 = vpop.f32.mrf.mxu0
        %v1194 = vadd.f32 0.0, %v1193
        %v1195 = vpop.f32.mrf.mxu0
        %v1196 = vpop.f32.mrf.mxu0
        %v1197 = vadd.f32 0.0, %v1196
        %v1198 = vpop.f32.mrf.mxu0
        %1199 = vmatprep.mubr.bf16.mxu0 0
        %1200 = vmatmul.mubr.bf16.gmra.mxu0 %v841
        %v1201 = vpop.f32.mrf.mxu0
        %v1202 = vadd.f32 0.0, %v1201
        %v1203 = vpop.f32.mrf.mxu0
        %v1204 = vpop.f32.mrf.mxu0
        %v1205 = vadd.f32 0.0, %v1204
        %v1206 = vpop.f32.mrf.mxu0
        %1207 = vmatprep.mubr.bf16.mxu0 0
        %1208 = vmatmul.mubr.bf16.gmra.mxu0 %v844
        %v1209 = vpop.f32.mrf.mxu0
        %v1210 = vadd.f32 0.0, %v1209
        %v1211 = vpop.f32.mrf.mxu0
        %v1212 = vpop.f32.mrf.mxu0
        %v1213 = vadd.f32 0.0, %v1212
        %v1214 = vpop.f32.mrf.mxu0
        %1215 = vmatprep.mubr.bf16.mxu0 0
        %1216 = vmatmul.mubr.bf16.gmra.mxu0 %v847
        %v1217 = vpop.f32.mrf.mxu0
        %v1218 = vadd.f32 0.0, %v1217
        %v1219 = vpop.f32.mrf.mxu0
        %v1220 = vpop.f32.mrf.mxu0
        %v1221 = vadd.f32 0.0, %v1220
        %v1222 = vpop.f32.mrf.mxu0
        %1223 = vmatprep.mubr.bf16.mxu0 0
        %1224 = vmatmul.mubr.bf16.gmra.mxu0 %v850
        %v1225 = vpop.f32.mrf.mxu0
        %v1226 = vadd.f32 0.0, %v1225
        %v1227 = vpop.f32.mrf.mxu0
        %v1228 = vpop.f32.mrf.mxu0
        %v1229 = vadd.f32 0.0, %v1228
        %v1230 = vpop.f32.mrf.mxu0
        %1231 = vmatprep.mubr.bf16.mxu0 0
        %1232 = vmatmul.mubr.bf16.gmra.mxu0 %v853
        %v1233 = vpop.f32.mrf.mxu0
        %v1234 = vadd.f32 0.0, %v1233
        %v1235 = vpop.f32.mrf.mxu0
        %v1236 = vpop.f32.mrf.mxu0
        %v1237 = vadd.f32 0.0, %v1236
        %v1238 = vpop.f32.mrf.mxu0
        %1239 = vmatprep.mubr.bf16.mxu0 0
        %1240 = vmatmul.mubr.bf16.gmra.mxu0 %v856
        %v1241 = vpop.f32.mrf.mxu0
        %v1242 = vadd.f32 0.0, %v1241
        %v1243 = vpop.f32.mrf.mxu0
        %v1244 = vpop.f32.mrf.mxu0
        %v1245 = vadd.f32 0.0, %v1244
        %v1246 = vpop.f32.mrf.mxu0
        %1247 = vmatprep.mubr.bf16.mxu0 0
        %1248 = vmatmul.mubr.bf16.gmra.mxu0 %v859
        %v1249 = vpop.f32.mrf.mxu0
        %v1250 = vadd.f32 0.0, %v1249
        %v1251 = vpop.f32.mrf.mxu0
        %v1252 = vpop.f32.mrf.mxu0
        %v1253 = vadd.f32 0.0, %v1252
        %v1254 = vpop.f32.mrf.mxu0
        %1255 = vmatprep.mubr.bf16.mxu0 0
        %1256 = vmatmul.mubr.bf16.gmra.mxu0 %v862
        %v1257 = vpop.f32.mrf.mxu0
        %v1258 = vadd.f32 0.0, %v1257
        %v1259 = vpop.f32.mrf.mxu0
        %v1260 = vpop.f32.mrf.mxu0
        %v1261 = vadd.f32 0.0, %v1260
        %v1262 = vpop.f32.mrf.mxu0
        %1263 = vmatprep.mubr.bf16.mxu0 0
        %1264 = vmatmul.mubr.bf16.gmra.mxu0 %v865
        %v1265 = vpop.f32.mrf.mxu0
        %v1266 = vadd.f32 0.0, %v1265
        %v1267 = vpop.f32.mrf.mxu0
        %v1268 = vpop.f32.mrf.mxu0
        %v1269 = vadd.f32 0.0, %v1268
        %v1270 = vpop.f32.mrf.mxu0
        %1271 = vmatprep.mubr.bf16.mxu0 0
        %1272 = vmatmul.mubr.bf16.gmra.mxu0 %v868
        %v1273 = vpop.f32.mrf.mxu0
        %v1274 = vadd.f32 0.0, %v1273
        %v1275 = vpop.f32.mrf.mxu0
        %v1276 = vpop.f32.mrf.mxu0
        %v1277 = vadd.f32 0.0, %v1276
        %v1278 = vpop.f32.mrf.mxu0
        %1279 = vmatprep.mubr.bf16.mxu0 0
        %1280 = vmatmul.mubr.bf16.gmra.mxu0 %v871
        %v1281 = vpop.f32.mrf.mxu0
        %v1282 = vadd.f32 0.0, %v1281
        %v1283 = vpop.f32.mrf.mxu0
        %v1284 = vpop.f32.mrf.mxu0
        %v1285 = vadd.f32 0.0, %v1284
        %v1286 = vpop.f32.mrf.mxu0
        %1287 = vmatprep.mubr.bf16.mxu0 0
        %1288 = vmatmul.mubr.bf16.gmra.mxu0 %v874
        %v1289 = vpop.f32.mrf.mxu0
        %v1290 = vadd.f32 0.0, %v1289
        %v1291 = vpop.f32.mrf.mxu0
        %v1292 = vpop.f32.mrf.mxu0
        %v1293 = vadd.f32 0.0, %v1292
        %v1294 = vpop.f32.mrf.mxu0
        %1295 = vmatprep.mubr.bf16.mxu0 0
        %1296 = vmatmul.mubr.bf16.gmra.mxu0 %v877
        %v1297 = vpop.f32.mrf.mxu0
        %v1298 = vadd.f32 0.0, %v1297
        %v1299 = vpop.f32.mrf.mxu0
        %v1300 = vpop.f32.mrf.mxu0
        %v1301 = vadd.f32 0.0, %v1300
        %v1302 = vpop.f32.mrf.mxu0
        %1303 = vmatprep.mubr.bf16.mxu0 0
        %1304 = vmatmul.mubr.bf16.gmra.mxu0 %v880
        %v1305 = vpop.f32.mrf.mxu0
        %v1306 = vadd.f32 0.0, %v1305
        %v1307 = vpop.f32.mrf.mxu0
        %v1308 = vpop.f32.mrf.mxu0
        %v1309 = vadd.f32 0.0, %v1308
        %v1310 = vpop.f32.mrf.mxu0
        %1311 = vmatprep.mubr.bf16.mxu0 0
        %1312 = vmatmul.mubr.bf16.gmra.mxu0 %v883
        %v1313 = vpop.f32.mrf.mxu0
        %v1314 = vadd.f32 0.0, %v1313
        %v1315 = vpop.f32.mrf.mxu0
        %v1316 = vpop.f32.mrf.mxu0
        %v1317 = vadd.f32 0.0, %v1316
        %v1318 = vpop.f32.mrf.mxu0
        %1319 = vmatprep.mubr.bf16.mxu0 0
        %1320 = vmatmul.mubr.bf16.gmra.mxu0 %v886
        %v1321 = vpop.f32.mrf.mxu0
        %v1322 = vadd.f32 0.0, %v1321
        %v1323 = vpop.f32.mrf.mxu0
        %v1324 = vpop.f32.mrf.mxu0
        %v1325 = vadd.f32 0.0, %v1324
        %v1326 = vpop.f32.mrf.mxu0
        %1327 = vmatprep.mubr.bf16.mxu0 0
        %1328 = vmatmul.mubr.bf16.gmra.mxu0 %v889
        %v1329 = vpop.f32.mrf.mxu0
        %v1330 = vadd.f32 0.0, %v1329
        %v1331 = vpop.f32.mrf.mxu0
        %v1332 = vpop.f32.mrf.mxu0
        %v1333 = vadd.f32 0.0, %v1332
        %v1334 = vpop.f32.mrf.mxu0
        %1335 = vmatprep.mubr.bf16.mxu0 0
        %1336 = vmatmul.mubr.bf16.gmra.mxu0 %v892
        %v1337 = vpop.f32.mrf.mxu0
        %v1338 = vadd.f32 0.0, %v1337
        %v1339 = vpop.f32.mrf.mxu0
        %v1340 = vpop.f32.mrf.mxu0
        %v1341 = vadd.f32 0.0, %v1340
        %v1342 = vpop.f32.mrf.mxu0
        %1343 = vmatprep.mubr.bf16.mxu0 0
        %1344 = vmatmul.mubr.bf16.gmra.mxu0 %v895
        %v1345 = vpop.f32.mrf.mxu0
        %v1346 = vadd.f32 0.0, %v1345
        %v1347 = vpop.f32.mrf.mxu0
        %v1348 = vpop.f32.mrf.mxu0
        %v1349 = vadd.f32 0.0, %v1348
        %v1350 = vpop.f32.mrf.mxu0
        %1351 = vmatprep.mubr.bf16.mxu0 0
        %1352 = vmatmul.mubr.bf16.gmra.mxu0 %v898
        %v1353 = vpop.f32.mrf.mxu0
        %v1354 = vadd.f32 0.0, %v1353
        %v1355 = vpop.f32.mrf.mxu0
        %v1356 = vpop.f32.mrf.mxu0
        %v1357 = vadd.f32 0.0, %v1356
        %v1358 = vpop.f32.mrf.mxu0
        %1359 = vmatprep.mubr.bf16.mxu0 0
        %1360 = vmatmul.mubr.bf16.gmra.mxu0 %v901
        %v1361 = vpop.f32.mrf.mxu0
        %v1362 = vadd.f32 0.0, %v1361
        %v1363 = vpop.f32.mrf.mxu0
        %v1364 = vpop.f32.mrf.mxu0
        %v1365 = vadd.f32 0.0, %v1364
        %v1366 = vpop.f32.mrf.mxu0
        %1367 = vmatprep.mubr.bf16.mxu0 0
        %1368 = vmatmul.mubr.bf16.gmra.mxu0 %v904
        %v1369 = vpop.f32.mrf.mxu0
        %v1370 = vadd.f32 0.0, %v1369
        %v1371 = vpop.f32.mrf.mxu0
        %v1372 = vpop.f32.mrf.mxu0
        %v1373 = vadd.f32 0.0, %v1372
        %v1374 = vpop.f32.mrf.mxu0
        %1375 = vmatprep.mubr.bf16.mxu0 0
        %1376 = vmatmul.mubr.bf16.gmra.mxu0 %v907
        %v1377 = vpop.f32.mrf.mxu0
        %v1378 = vadd.f32 0.0, %v1377
        %v1379 = vpop.f32.mrf.mxu0
        %v1380 = vpop.f32.mrf.mxu0
        %v1381 = vadd.f32 0.0, %v1380
        %v1382 = vpop.f32.mrf.mxu0
        %1383 = vmatprep.mubr.bf16.mxu0 0
        %1384 = vmatmul.mubr.bf16.gmra.mxu0 %v910
        %v1385 = vpop.f32.mrf.mxu0
        %v1386 = vadd.f32 0.0, %v1385
        %v1387 = vpop.f32.mrf.mxu0
        %v1388 = vpop.f32.mrf.mxu0
        %v1389 = vadd.f32 0.0, %v1388
        %v1390 = vpop.f32.mrf.mxu0
        %1391 = vmatprep.mubr.bf16.mxu0 0
        %1392 = vmatmul.mubr.bf16.gmra.mxu0 %v913
        %v1393 = vpop.f32.mrf.mxu0
        %v1394 = vadd.f32 0.0, %v1393
        %v1395 = vpop.f32.mrf.mxu0
        %v1396 = vpop.f32.mrf.mxu0
        %v1397 = vadd.f32 0.0, %v1396
        %v1398 = vpop.f32.mrf.mxu0
        %1399 = vmatprep.mubr.bf16.mxu0 0
        %1400 = vmatmul.mubr.bf16.gmra.mxu0 %v916
        %v1401 = vpop.f32.mrf.mxu0
        %v1402 = vadd.f32 0.0, %v1401
        %v1403 = vpop.f32.mrf.mxu0
        %v1404 = vpop.f32.mrf.mxu0
        %v1405 = vadd.f32 0.0, %v1404
        %v1406 = vpop.f32.mrf.mxu0
        %1407 = vmatprep.mubr.bf16.mxu0 0
        %1408 = vmatmul.mubr.bf16.gmra.mxu0 %v919
        %v1409 = vpop.f32.mrf.mxu0
        %v1410 = vadd.f32 0.0, %v1409
        %v1411 = vpop.f32.mrf.mxu0
        %v1412 = vpop.f32.mrf.mxu0
        %v1413 = vadd.f32 0.0, %v1412
        %v1414 = vpop.f32.mrf.mxu0
        %1415 = vmatprep.mubr.bf16.mxu0 0
        %1416 = vmatmul.mubr.bf16.gmra.mxu0 %v922
        %v1417 = vpop.f32.mrf.mxu0
        %v1418 = vadd.f32 0.0, %v1417
        %v1419 = vpop.f32.mrf.mxu0
        %v1420 = vpop.f32.mrf.mxu0
        %v1421 = vadd.f32 0.0, %v1420
        %v1422 = vpop.f32.mrf.mxu0
        %1423 = vmatprep.mubr.bf16.mxu0 0
        %1424 = vmatmul.mubr.bf16.gmra.mxu0 %v925
        %v1425 = vpop.f32.mrf.mxu0
        %v1426 = vadd.f32 0.0, %v1425
        %v1427 = vpop.f32.mrf.mxu0
        %v1428 = vpop.f32.mrf.mxu0
        %v1429 = vadd.f32 0.0, %v1428
        %v1430 = vpop.f32.mrf.mxu0
        %1431 = vmatprep.mubr.bf16.mxu0 0
        %1432 = vmatmul.mubr.bf16.gmra.mxu0 %v928
        %v1433 = vpop.f32.mrf.mxu0
        %v1434 = vadd.f32 0.0, %v1433
        %v1435 = vpop.f32.mrf.mxu0
        %v1436 = vpop.f32.mrf.mxu0
        %v1437 = vadd.f32 0.0, %v1436
        %v1438 = vpop.f32.mrf.mxu0
        %1439 = vmatprep.mubr.bf16.mxu0 0
        %1440 = vmatmul.mubr.bf16.gmra.mxu0 %v931
        %v1441 = vpop.f32.mrf.mxu0
        %v1442 = vadd.f32 0.0, %v1441
        %v1443 = vpop.f32.mrf.mxu0
        %v1444 = vpop.f32.mrf.mxu0
        %v1445 = vadd.f32 0.0, %v1444
        %v1446 = vpop.f32.mrf.mxu0
        %1447 = vmatprep.mubr.bf16.mxu0 0
        %1448 = vmatmul.mubr.bf16.gmra.mxu0 %v934
        %v1449 = vpop.f32.mrf.mxu0
        %v1450 = vadd.f32 0.0, %v1449
        %v1451 = vpop.f32.mrf.mxu0
        %v1452 = vpop.f32.mrf.mxu0
        %v1453 = vadd.f32 0.0, %v1452
        %v1454 = vpop.f32.mrf.mxu0
        %1455 = vmatprep.mubr.bf16.mxu0 0
        %1456 = vmatmul.mubr.bf16.gmra.mxu0 %v937
        %v1457 = vpop.f32.mrf.mxu0
        %v1458 = vadd.f32 0.0, %v1457
        %v1459 = vpop.f32.mrf.mxu0
        %v1460 = vpop.f32.mrf.mxu0
        %v1461 = vadd.f32 0.0, %v1460
        %v1462 = vpop.f32.mrf.mxu0
        %1463 = vmatprep.mubr.bf16.mxu0 0
        %1464 = vmatmul.mubr.bf16.gmra.mxu0 %v940
        %v1465 = vpop.f32.mrf.mxu0
        %v1466 = vadd.f32 0.0, %v1465
        %v1467 = vpop.f32.mrf.mxu0
        %v1468 = vpop.f32.mrf.mxu0
        %v1469 = vadd.f32 0.0, %v1468
        %v1470 = vpop.f32.mrf.mxu0
        %1471 = vmatprep.mubr.bf16.mxu0 0
        %1472 = vmatmul.mubr.bf16.gmra.mxu0 %v943
        %v1473 = vpop.f32.mrf.mxu0
        %v1474 = vadd.f32 0.0, %v1473
        %v1475 = vpop.f32.mrf.mxu0
        %v1476 = vpop.f32.mrf.mxu0
        %v1477 = vadd.f32 0.0, %v1476
        %v1478 = vpop.f32.mrf.mxu0
        %1479 = vmatprep.mubr.bf16.mxu0 0
        %1480 = vmatmul.mubr.bf16.gmra.mxu0 %v946
        %v1481 = vpop.f32.mrf.mxu0
        %v1482 = vadd.f32 0.0, %v1481
        %v1483 = vpop.f32.mrf.mxu0
        %v1484 = vpop.f32.mrf.mxu0
        %v1485 = vadd.f32 0.0, %v1484
        %v1486 = vpop.f32.mrf.mxu0
        %1487 = vmatprep.mubr.bf16.mxu0 0
        %1488 = vmatmul.mubr.bf16.gmra.mxu0 %v949
        %v1489 = vpop.f32.mrf.mxu0
        %v1490 = vadd.f32 0.0, %v1489
        %v1491 = vpop.f32.mrf.mxu0
        %v1492 = vpop.f32.mrf.mxu0
        %v1493 = vadd.f32 0.0, %v1492
        %v1494 = vpop.f32.mrf.mxu0
        %1495 = vdwg.mxu0
        %v1496 = vld [vmem:[%s250] sm:$0x1]
        %v1498 = vlaneseq
        %v1499 = vshrl.u32 %v1498, 7
        %v1500 = vsub.s32 0, %v1499
        %v1501 = vrot.slane %v1496, %v1500
        %v1503 = vmul.f32 %v986, %v1501
        %v1504 = vmul.f32 %v989, %v1501
        %v1505 = vmul.f32 %v994, %v1501
        %v1506 = vmul.f32 %v997, %v1501
        %v1507 = vmul.f32 %v1002, %v1501
        %v1508 = vmul.f32 %v1005, %v1501
        %v1509 = vmul.f32 %v1010, %v1501
        %v1510 = vmul.f32 %v1013, %v1501
        %v1511 = vmul.f32 %v1018, %v1501
        %v1512 = vmul.f32 %v1021, %v1501
        %v1513 = vmul.f32 %v1026, %v1501
        %v1514 = vmul.f32 %v1029, %v1501
        %v1515 = vmul.f32 %v1034, %v1501
        %v1516 = vmul.f32 %v1037, %v1501
        %v1517 = vmul.f32 %v1042, %v1501
        %v1518 = vmul.f32 %v1045, %v1501
        %v1519 = vmul.f32 %v1050, %v1501
        %v1520 = vmul.f32 %v1053, %v1501
        %v1521 = vmul.f32 %v1058, %v1501
        %v1522 = vmul.f32 %v1061, %v1501
        %v1523 = vmul.f32 %v1066, %v1501
        %v1524 = vmul.f32 %v1069, %v1501
        %v1525 = vmul.f32 %v1074, %v1501
        %v1526 = vmul.f32 %v1077, %v1501
        %v1527 = vmul.f32 %v1082, %v1501
        %v1528 = vmul.f32 %v1085, %v1501
        %v1529 = vmul.f32 %v1090, %v1501
        %v1530 = vmul.f32 %v1093, %v1501
        %v1531 = vmul.f32 %v1098, %v1501
        %v1532 = vmul.f32 %v1101, %v1501
        %v1533 = vmul.f32 %v1106, %v1501
        %v1534 = vmul.f32 %v1109, %v1501
        %v1535 = vmul.f32 %v1114, %v1501
        %v1536 = vmul.f32 %v1117, %v1501
        %v1537 = vmul.f32 %v1122, %v1501
        %v1538 = vmul.f32 %v1125, %v1501
        %v1539 = vmul.f32 %v1130, %v1501
        %v1540 = vmul.f32 %v1133, %v1501
        %v1541 = vmul.f32 %v1138, %v1501
        %v1542 = vmul.f32 %v1141, %v1501
        %v1543 = vmul.f32 %v1146, %v1501
        %v1544 = vmul.f32 %v1149, %v1501
        %v1545 = vmul.f32 %v1154, %v1501
        %v1546 = vmul.f32 %v1157, %v1501
        %v1547 = vmul.f32 %v1162, %v1501
        %v1548 = vmul.f32 %v1165, %v1501
        %v1549 = vmul.f32 %v1170, %v1501
        %v1550 = vmul.f32 %v1173, %v1501
        %v1551 = vmul.f32 %v1178, %v1501
        %v1552 = vmul.f32 %v1181, %v1501
        %v1553 = vmul.f32 %v1186, %v1501
        %v1554 = vmul.f32 %v1189, %v1501
        %v1555 = vmul.f32 %v1194, %v1501
        %v1556 = vmul.f32 %v1197, %v1501
        %v1557 = vmul.f32 %v1202, %v1501
        %v1558 = vmul.f32 %v1205, %v1501
        %v1559 = vmul.f32 %v1210, %v1501
        %v1560 = vmul.f32 %v1213, %v1501
        %v1561 = vmul.f32 %v1218, %v1501
        %v1562 = vmul.f32 %v1221, %v1501
        %v1563 = vmul.f32 %v1226, %v1501
        %v1564 = vmul.f32 %v1229, %v1501
        %v1565 = vmul.f32 %v1234, %v1501
        %v1566 = vmul.f32 %v1237, %v1501
        %v1567 = vmul.f32 %v1242, %v1501
        %v1568 = vmul.f32 %v1245, %v1501
        %v1569 = vmul.f32 %v1250, %v1501
        %v1570 = vmul.f32 %v1253, %v1501
        %v1571 = vmul.f32 %v1258, %v1501
        %v1572 = vmul.f32 %v1261, %v1501
        %v1573 = vmul.f32 %v1266, %v1501
        %v1574 = vmul.f32 %v1269, %v1501
        %v1575 = vmul.f32 %v1274, %v1501
        %v1576 = vmul.f32 %v1277, %v1501
        %v1577 = vmul.f32 %v1282, %v1501
        %v1578 = vmul.f32 %v1285, %v1501
        %v1579 = vmul.f32 %v1290, %v1501
        %v1580 = vmul.f32 %v1293, %v1501
        %v1581 = vmul.f32 %v1298, %v1501
        %v1582 = vmul.f32 %v1301, %v1501
        %v1583 = vmul.f32 %v1306, %v1501
        %v1584 = vmul.f32 %v1309, %v1501
        %v1585 = vmul.f32 %v1314, %v1501
        %v1586 = vmul.f32 %v1317, %v1501
        %v1587 = vmul.f32 %v1322, %v1501
        %v1588 = vmul.f32 %v1325, %v1501
        %v1589 = vmul.f32 %v1330, %v1501
        %v1590 = vmul.f32 %v1333, %v1501
        %v1591 = vmul.f32 %v1338, %v1501
        %v1592 = vmul.f32 %v1341, %v1501
        %v1593 = vmul.f32 %v1346, %v1501
        %v1594 = vmul.f32 %v1349, %v1501
        %v1595 = vmul.f32 %v1354, %v1501
        %v1596 = vmul.f32 %v1357, %v1501
        %v1597 = vmul.f32 %v1362, %v1501
        %v1598 = vmul.f32 %v1365, %v1501
        %v1599 = vmul.f32 %v1370, %v1501
        %v1600 = vmul.f32 %v1373, %v1501
        %v1601 = vmul.f32 %v1378, %v1501
        %v1602 = vmul.f32 %v1381, %v1501
        %v1603 = vmul.f32 %v1386, %v1501
        %v1604 = vmul.f32 %v1389, %v1501
        %v1605 = vmul.f32 %v1394, %v1501
        %v1606 = vmul.f32 %v1397, %v1501
        %v1607 = vmul.f32 %v1402, %v1501
        %v1608 = vmul.f32 %v1405, %v1501
        %v1609 = vmul.f32 %v1410, %v1501
        %v1610 = vmul.f32 %v1413, %v1501
        %v1611 = vmul.f32 %v1418, %v1501
        %v1612 = vmul.f32 %v1421, %v1501
        %v1613 = vmul.f32 %v1426, %v1501
        %v1614 = vmul.f32 %v1429, %v1501
        %v1615 = vmul.f32 %v1434, %v1501
        %v1616 = vmul.f32 %v1437, %v1501
        %v1617 = vmul.f32 %v1442, %v1501
        %v1618 = vmul.f32 %v1445, %v1501
        %v1619 = vmul.f32 %v1450, %v1501
        %v1620 = vmul.f32 %v1453, %v1501
        %v1621 = vmul.f32 %v1458, %v1501
        %v1622 = vmul.f32 %v1461, %v1501
        %v1623 = vmul.f32 %v1466, %v1501
        %v1624 = vmul.f32 %v1469, %v1501
        %v1625 = vmul.f32 %v1474, %v1501
        %v1626 = vmul.f32 %v1477, %v1501
        %v1627 = vmul.f32 %v1482, %v1501
        %v1628 = vmul.f32 %v1485, %v1501
        %v1629 = vmul.f32 %v1490, %v1501
        %v1630 = vmul.f32 %v1493, %v1501
        %v1631 = vld [vmem:[%s258] sm:$0x1]
        %v1633 = vlaneseq
        %v1634 = vshrl.u32 %v1633, 7
        %v1635 = vsub.s32 0, %v1634
        %v1636 = vrot.slane %v1631, %v1635
        %v1638 = vadd.f32 %v1503, %v1636
        %v1639 = vadd.f32 %v1504, %v1636
        %v1640 = vadd.f32 %v1505, %v1636
        %v1641 = vadd.f32 %v1506, %v1636
        %v1642 = vadd.f32 %v1507, %v1636
        %v1643 = vadd.f32 %v1508, %v1636
        %v1644 = vadd.f32 %v1509, %v1636
        %v1645 = vadd.f32 %v1510, %v1636
        %v1646 = vadd.f32 %v1511, %v1636
        %v1647 = vadd.f32 %v1512, %v1636
        %v1648 = vadd.f32 %v1513, %v1636
        %v1649 = vadd.f32 %v1514, %v1636
        %v1650 = vadd.f32 %v1515, %v1636
        %v1651 = vadd.f32 %v1516, %v1636
        %v1652 = vadd.f32 %v1517, %v1636
        %v1653 = vadd.f32 %v1518, %v1636
        %v1654 = vadd.f32 %v1519, %v1636
        %v1655 = vadd.f32 %v1520, %v1636
        %v1656 = vadd.f32 %v1521, %v1636
        %v1657 = vadd.f32 %v1522, %v1636
        %v1658 = vadd.f32 %v1523, %v1636
        %v1659 = vadd.f32 %v1524, %v1636
        %v1660 = vadd.f32 %v1525, %v1636
        %v1661 = vadd.f32 %v1526, %v1636
        %v1662 = vadd.f32 %v1527, %v1636
        %v1663 = vadd.f32 %v1528, %v1636
        %v1664 = vadd.f32 %v1529, %v1636
        %v1665 = vadd.f32 %v1530, %v1636
        %v1666 = vadd.f32 %v1531, %v1636
        %v1667 = vadd.f32 %v1532, %v1636
        %v1668 = vadd.f32 %v1533, %v1636
        %v1669 = vadd.f32 %v1534, %v1636
        %v1670 = vadd.f32 %v1535, %v1636
        %v1671 = vadd.f32 %v1536, %v1636
        %v1672 = vadd.f32 %v1537, %v1636
        %v1673 = vadd.f32 %v1538, %v1636
        %v1674 = vadd.f32 %v1539, %v1636
        %v1675 = vadd.f32 %v1540, %v1636
        %v1676 = vadd.f32 %v1541, %v1636
        %v1677 = vadd.f32 %v1542, %v1636
        %v1678 = vadd.f32 %v1543, %v1636
        %v1679 = vadd.f32 %v1544, %v1636
        %v1680 = vadd.f32 %v1545, %v1636
        %v1681 = vadd.f32 %v1546, %v1636
        %v1682 = vadd.f32 %v1547, %v1636
        %v1683 = vadd.f32 %v1548, %v1636
        %v1684 = vadd.f32 %v1549, %v1636
        %v1685 = vadd.f32 %v1550, %v1636
        %v1686 = vadd.f32 %v1551, %v1636
        %v1687 = vadd.f32 %v1552, %v1636
        %v1688 = vadd.f32 %v1553, %v1636
        %v1689 = vadd.f32 %v1554, %v1636
        %v1690 = vadd.f32 %v1555, %v1636
        %v1691 = vadd.f32 %v1556, %v1636
        %v1692 = vadd.f32 %v1557, %v1636
        %v1693 = vadd.f32 %v1558, %v1636
        %v1694 = vadd.f32 %v1559, %v1636
        %v1695 = vadd.f32 %v1560, %v1636
        %v1696 = vadd.f32 %v1561, %v1636
        %v1697 = vadd.f32 %v1562, %v1636
        %v1698 = vadd.f32 %v1563, %v1636
        %v1699 = vadd.f32 %v1564, %v1636
        %v1700 = vadd.f32 %v1565, %v1636
        %v1701 = vadd.f32 %v1566, %v1636
        %v1702 = vadd.f32 %v1567, %v1636
        %v1703 = vadd.f32 %v1568, %v1636
        %v1704 = vadd.f32 %v1569, %v1636
        %v1705 = vadd.f32 %v1570, %v1636
        %v1706 = vadd.f32 %v1571, %v1636
        %v1707 = vadd.f32 %v1572, %v1636
        %v1708 = vadd.f32 %v1573, %v1636
        %v1709 = vadd.f32 %v1574, %v1636
        %v1710 = vadd.f32 %v1575, %v1636
        %v1711 = vadd.f32 %v1576, %v1636
        %v1712 = vadd.f32 %v1577, %v1636
        %v1713 = vadd.f32 %v1578, %v1636
        %v1714 = vadd.f32 %v1579, %v1636
        %v1715 = vadd.f32 %v1580, %v1636
        %v1716 = vadd.f32 %v1581, %v1636
        %v1717 = vadd.f32 %v1582, %v1636
        %v1718 = vadd.f32 %v1583, %v1636
        %v1719 = vadd.f32 %v1584, %v1636
        %v1720 = vadd.f32 %v1585, %v1636
        %v1721 = vadd.f32 %v1586, %v1636
        %v1722 = vadd.f32 %v1587, %v1636
        %v1723 = vadd.f32 %v1588, %v1636
        %v1724 = vadd.f32 %v1589, %v1636
        %v1725 = vadd.f32 %v1590, %v1636
        %v1726 = vadd.f32 %v1591, %v1636
        %v1727 = vadd.f32 %v1592, %v1636
        %v1728 = vadd.f32 %v1593, %v1636
        %v1729 = vadd.f32 %v1594, %v1636
        %v1730 = vadd.f32 %v1595, %v1636
        %v1731 = vadd.f32 %v1596, %v1636
        %v1732 = vadd.f32 %v1597, %v1636
        %v1733 = vadd.f32 %v1598, %v1636
        %v1734 = vadd.f32 %v1599, %v1636
        %v1735 = vadd.f32 %v1600, %v1636
        %v1736 = vadd.f32 %v1601, %v1636
        %v1737 = vadd.f32 %v1602, %v1636
        %v1738 = vadd.f32 %v1603, %v1636
        %v1739 = vadd.f32 %v1604, %v1636
        %v1740 = vadd.f32 %v1605, %v1636
        %v1741 = vadd.f32 %v1606, %v1636
        %v1742 = vadd.f32 %v1607, %v1636
        %v1743 = vadd.f32 %v1608, %v1636
        %v1744 = vadd.f32 %v1609, %v1636
        %v1745 = vadd.f32 %v1610, %v1636
        %v1746 = vadd.f32 %v1611, %v1636
        %v1747 = vadd.f32 %v1612, %v1636
        %v1748 = vadd.f32 %v1613, %v1636
        %v1749 = vadd.f32 %v1614, %v1636
        %v1750 = vadd.f32 %v1615, %v1636
        %v1751 = vadd.f32 %v1616, %v1636
        %v1752 = vadd.f32 %v1617, %v1636
        %v1753 = vadd.f32 %v1618, %v1636
        %v1754 = vadd.f32 %v1619, %v1636
        %v1755 = vadd.f32 %v1620, %v1636
        %v1756 = vadd.f32 %v1621, %v1636
        %v1757 = vadd.f32 %v1622, %v1636
        %v1758 = vadd.f32 %v1623, %v1636
        %v1759 = vadd.f32 %v1624, %v1636
        %v1760 = vadd.f32 %v1625, %v1636
        %v1761 = vadd.f32 %v1626, %v1636
        %v1762 = vadd.f32 %v1627, %v1636
        %v1763 = vadd.f32 %v1628, %v1636
        %v1764 = vadd.f32 %v1629, %v1636
        %v1765 = vadd.f32 %v1630, %v1636
        %v1766 = vmax.f32 %v1638, 0.0
        %v1767 = vmax.f32 %v1639, 0.0
        %v1768 = vmax.f32 %v1640, 0.0
        %v1769 = vmax.f32 %v1641, 0.0
        %v1770 = vmax.f32 %v1642, 0.0
        %v1771 = vmax.f32 %v1643, 0.0
        %v1772 = vmax.f32 %v1644, 0.0
        %v1773 = vmax.f32 %v1645, 0.0
        %v1774 = vmax.f32 %v1646, 0.0
        %v1775 = vmax.f32 %v1647, 0.0
        %v1776 = vmax.f32 %v1648, 0.0
        %v1777 = vmax.f32 %v1649, 0.0
        %v1778 = vmax.f32 %v1650, 0.0
        %v1779 = vmax.f32 %v1651, 0.0
        %v1780 = vmax.f32 %v1652, 0.0
        %v1781 = vmax.f32 %v1653, 0.0
        %v1782 = vmax.f32 %v1654, 0.0
        %v1783 = vmax.f32 %v1655, 0.0
        %v1784 = vmax.f32 %v1656, 0.0
        %v1785 = vmax.f32 %v1657, 0.0
        %v1786 = vmax.f32 %v1658, 0.0
        %v1787 = vmax.f32 %v1659, 0.0
        %v1788 = vmax.f32 %v1660, 0.0
        %v1789 = vmax.f32 %v1661, 0.0
        %v1790 = vmax.f32 %v1662, 0.0
        %v1791 = vmax.f32 %v1663, 0.0
        %v1792 = vmax.f32 %v1664, 0.0
        %v1793 = vmax.f32 %v1665, 0.0
        %v1794 = vmax.f32 %v1666, 0.0
        %v1795 = vmax.f32 %v1667, 0.0
        %v1796 = vmax.f32 %v1668, 0.0
        %v1797 = vmax.f32 %v1669, 0.0
        %v1798 = vmax.f32 %v1670, 0.0
        %v1799 = vmax.f32 %v1671, 0.0
        %v1800 = vmax.f32 %v1672, 0.0
        %v1801 = vmax.f32 %v1673, 0.0
        %v1802 = vmax.f32 %v1674, 0.0
        %v1803 = vmax.f32 %v1675, 0.0
        %v1804 = vmax.f32 %v1676, 0.0
        %v1805 = vmax.f32 %v1677, 0.0
        %v1806 = vmax.f32 %v1678, 0.0
        %v1807 = vmax.f32 %v1679, 0.0
        %v1808 = vmax.f32 %v1680, 0.0
        %v1809 = vmax.f32 %v1681, 0.0
        %v1810 = vmax.f32 %v1682, 0.0
        %v1811 = vmax.f32 %v1683, 0.0
        %v1812 = vmax.f32 %v1684, 0.0
        %v1813 = vmax.f32 %v1685, 0.0
        %v1814 = vmax.f32 %v1686, 0.0
        %v1815 = vmax.f32 %v1687, 0.0
        %v1816 = vmax.f32 %v1688, 0.0
        %v1817 = vmax.f32 %v1689, 0.0
        %v1818 = vmax.f32 %v1690, 0.0
        %v1819 = vmax.f32 %v1691, 0.0
        %v1820 = vmax.f32 %v1692, 0.0
        %v1821 = vmax.f32 %v1693, 0.0
        %v1822 = vmax.f32 %v1694, 0.0
        %v1823 = vmax.f32 %v1695, 0.0
        %v1824 = vmax.f32 %v1696, 0.0
        %v1825 = vmax.f32 %v1697, 0.0
        %v1826 = vmax.f32 %v1698, 0.0
        %v1827 = vmax.f32 %v1699, 0.0
        %v1828 = vmax.f32 %v1700, 0.0
        %v1829 = vmax.f32 %v1701, 0.0
        %v1830 = vmax.f32 %v1702, 0.0
        %v1831 = vmax.f32 %v1703, 0.0
        %v1832 = vmax.f32 %v1704, 0.0
        %v1833 = vmax.f32 %v1705, 0.0
        %v1834 = vmax.f32 %v1706, 0.0
        %v1835 = vmax.f32 %v1707, 0.0
        %v1836 = vmax.f32 %v1708, 0.0
        %v1837 = vmax.f32 %v1709, 0.0
        %v1838 = vmax.f32 %v1710, 0.0
        %v1839 = vmax.f32 %v1711, 0.0
        %v1840 = vmax.f32 %v1712, 0.0
        %v1841 = vmax.f32 %v1713, 0.0
        %v1842 = vmax.f32 %v1714, 0.0
        %v1843 = vmax.f32 %v1715, 0.0
        %v1844 = vmax.f32 %v1716, 0.0
        %v1845 = vmax.f32 %v1717, 0.0
        %v1846 = vmax.f32 %v1718, 0.0
        %v1847 = vmax.f32 %v1719, 0.0
        %v1848 = vmax.f32 %v1720, 0.0
        %v1849 = vmax.f32 %v1721, 0.0
        %v1850 = vmax.f32 %v1722, 0.0
        %v1851 = vmax.f32 %v1723, 0.0
        %v1852 = vmax.f32 %v1724, 0.0
        %v1853 = vmax.f32 %v1725, 0.0
        %v1854 = vmax.f32 %v1726, 0.0
        %v1855 = vmax.f32 %v1727, 0.0
        %v1856 = vmax.f32 %v1728, 0.0
        %v1857 = vmax.f32 %v1729, 0.0
        %v1858 = vmax.f32 %v1730, 0.0
        %v1859 = vmax.f32 %v1731, 0.0
        %v1860 = vmax.f32 %v1732, 0.0
        %v1861 = vmax.f32 %v1733, 0.0
        %v1862 = vmax.f32 %v1734, 0.0
        %v1863 = vmax.f32 %v1735, 0.0
        %v1864 = vmax.f32 %v1736, 0.0
        %v1865 = vmax.f32 %v1737, 0.0
        %v1866 = vmax.f32 %v1738, 0.0
        %v1867 = vmax.f32 %v1739, 0.0
        %v1868 = vmax.f32 %v1740, 0.0
        %v1869 = vmax.f32 %v1741, 0.0
        %v1870 = vmax.f32 %v1742, 0.0
        %v1871 = vmax.f32 %v1743, 0.0
        %v1872 = vmax.f32 %v1744, 0.0
        %v1873 = vmax.f32 %v1745, 0.0
        %v1874 = vmax.f32 %v1746, 0.0
        %v1875 = vmax.f32 %v1747, 0.0
        %v1876 = vmax.f32 %v1748, 0.0
        %v1877 = vmax.f32 %v1749, 0.0
        %v1878 = vmax.f32 %v1750, 0.0
        %v1879 = vmax.f32 %v1751, 0.0
        %v1880 = vmax.f32 %v1752, 0.0
        %v1881 = vmax.f32 %v1753, 0.0
        %v1882 = vmax.f32 %v1754, 0.0
        %v1883 = vmax.f32 %v1755, 0.0
        %v1884 = vmax.f32 %v1756, 0.0
        %v1885 = vmax.f32 %v1757, 0.0
        %v1886 = vmax.f32 %v1758, 0.0
        %v1887 = vmax.f32 %v1759, 0.0
        %v1888 = vmax.f32 %v1760, 0.0
        %v1889 = vmax.f32 %v1761, 0.0
        %v1890 = vmax.f32 %v1762, 0.0
        %v1891 = vmax.f32 %v1763, 0.0
        %v1892 = vmax.f32 %v1764, 0.0
        %v1893 = vmax.f32 %v1765, 0.0
        %1894 = vst [vmem:[%s295] sm:$0xff] %v1766
        %1895 = vst [vmem:[%s295 + $0x8] sm:$0xff] %v1767
        %1896 = vst [vmem:[%s295 + $0x10] sm:$0xff] %v1768
        %1897 = vst [vmem:[%s295 + $0x18] sm:$0xff] %v1769
        %1898 = vst [vmem:[%s295 + $0x20] sm:$0xff] %v1770
        %1899 = vst [vmem:[%s295 + $0x28] sm:$0xff] %v1771
        %1900 = vst [vmem:[%s295 + $0x30] sm:$0xff] %v1772
        %1901 = vst [vmem:[%s295 + $0x38] sm:$0xff] %v1773
        %1902 = vst [vmem:[%s295 + $0x40] sm:$0xff] %v1774
        %1903 = vst [vmem:[%s295 + $0x48] sm:$0xff] %v1775
        %1904 = vst [vmem:[%s295 + $0x50] sm:$0xff] %v1776
        %1905 = vst [vmem:[%s295 + $0x58] sm:$0xff] %v1777
        %1906 = vst [vmem:[%s295 + $0x60] sm:$0xff] %v1778
        %1907 = vst [vmem:[%s295 + $0x68] sm:$0xff] %v1779
        %1908 = vst [vmem:[%s295 + $0x70] sm:$0xff] %v1780
        %1909 = vst [vmem:[%s295 + $0x78] sm:$0xff] %v1781
        %1910 = vst [vmem:[%s295 + $0x80] sm:$0xff] %v1782
        %1911 = vst [vmem:[%s295 + $0x88] sm:$0xff] %v1783
        %1912 = vst [vmem:[%s295 + $0x90] sm:$0xff] %v1784
        %1913 = vst [vmem:[%s295 + $0x98] sm:$0xff] %v1785
        %1914 = vst [vmem:[%s295 + $0xa0] sm:$0xff] %v1786
        %1915 = vst [vmem:[%s295 + $0xa8] sm:$0xff] %v1787
        %1916 = vst [vmem:[%s295 + $0xb0] sm:$0xff] %v1788
        %1917 = vst [vmem:[%s295 + $0xb8] sm:$0xff] %v1789
        %1918 = vst [vmem:[%s295 + $0xc0] sm:$0xff] %v1790
        %1919 = vst [vmem:[%s295 + $0xc8] sm:$0xff] %v1791
        %1920 = vst [vmem:[%s295 + $0xd0] sm:$0xff] %v1792
        %1921 = vst [vmem:[%s295 + $0xd8] sm:$0xff] %v1793
        %1922 = vst [vmem:[%s295 + $0xe0] sm:$0xff] %v1794
        %1923 = vst [vmem:[%s295 + $0xe8] sm:$0xff] %v1795
        %1924 = vst [vmem:[%s295 + $0xf0] sm:$0xff] %v1796
        %1925 = vst [vmem:[%s295 + $0xf8] sm:$0xff] %v1797
        %1926 = vst [vmem:[%s295 + $0x100] sm:$0xff] %v1798
        %1927 = vst [vmem:[%s295 + $0x108] sm:$0xff] %v1799
        %1928 = vst [vmem:[%s295 + $0x110] sm:$0xff] %v1800
        %1929 = vst [vmem:[%s295 + $0x118] sm:$0xff] %v1801
        %1930 = vst [vmem:[%s295 + $0x120] sm:$0xff] %v1802
        %1931 = vst [vmem:[%s295 + $0x128] sm:$0xff] %v1803
        %1932 = vst [vmem:[%s295 + $0x130] sm:$0xff] %v1804
        %1933 = vst [vmem:[%s295 + $0x138] sm:$0xff] %v1805
        %1934 = vst [vmem:[%s295 + $0x140] sm:$0xff] %v1806
        %1935 = vst [vmem:[%s295 + $0x148] sm:$0xff] %v1807
        %1936 = vst [vmem:[%s295 + $0x150] sm:$0xff] %v1808
        %1937 = vst [vmem:[%s295 + $0x158] sm:$0xff] %v1809
        %1938 = vst [vmem:[%s295 + $0x160] sm:$0xff] %v1810
        %1939 = vst [vmem:[%s295 + $0x168] sm:$0xff] %v1811
        %1940 = vst [vmem:[%s295 + $0x170] sm:$0xff] %v1812
        %1941 = vst [vmem:[%s295 + $0x178] sm:$0xff] %v1813
        %1942 = vst [vmem:[%s295 + $0x180] sm:$0xff] %v1814
        %1943 = vst [vmem:[%s295 + $0x188] sm:$0xff] %v1815
        %1944 = vst [vmem:[%s295 + $0x190] sm:$0xff] %v1816
        %1945 = vst [vmem:[%s295 + $0x198] sm:$0xff] %v1817
        %1946 = vst [vmem:[%s295 + $0x1a0] sm:$0xff] %v1818
        %1947 = vst [vmem:[%s295 + $0x1a8] sm:$0xff] %v1819
        %1948 = vst [vmem:[%s295 + $0x1b0] sm:$0xff] %v1820
        %1949 = vst [vmem:[%s295 + $0x1b8] sm:$0xff] %v1821
        %1950 = vst [vmem:[%s295 + $0x1c0] sm:$0xff] %v1822
        %1951 = vst [vmem:[%s295 + $0x1c8] sm:$0xff] %v1823
        %1952 = vst [vmem:[%s295 + $0x1d0] sm:$0xff] %v1824
        %1953 = vst [vmem:[%s295 + $0x1d8] sm:$0xff] %v1825
        %1954 = vst [vmem:[%s295 + $0x1e0] sm:$0xff] %v1826
        %1955 = vst [vmem:[%s295 + $0x1e8] sm:$0xff] %v1827
        %1956 = vst [vmem:[%s295 + $0x1f0] sm:$0xff] %v1828
        %1957 = vst [vmem:[%s295 + $0x1f8] sm:$0xff] %v1829
        %1958 = vst [vmem:[%s295 + $0x200] sm:$0xff] %v1830
        %1959 = vst [vmem:[%s295 + $0x208] sm:$0xff] %v1831
        %1960 = vst [vmem:[%s295 + $0x210] sm:$0xff] %v1832
        %1961 = vst [vmem:[%s295 + $0x218] sm:$0xff] %v1833
        %1962 = vst [vmem:[%s295 + $0x220] sm:$0xff] %v1834
        %1963 = vst [vmem:[%s295 + $0x228] sm:$0xff] %v1835
        %1964 = vst [vmem:[%s295 + $0x230] sm:$0xff] %v1836
        %1965 = vst [vmem:[%s295 + $0x238] sm:$0xff] %v1837
        %1966 = vst [vmem:[%s295 + $0x240] sm:$0xff] %v1838
        %1967 = vst [vmem:[%s295 + $0x248] sm:$0xff] %v1839
        %1968 = vst [vmem:[%s295 + $0x250] sm:$0xff] %v1840
        %1969 = vst [vmem:[%s295 + $0x258] sm:$0xff] %v1841
        %1970 = vst [vmem:[%s295 + $0x260] sm:$0xff] %v1842
        %1971 = vst [vmem:[%s295 + $0x268] sm:$0xff] %v1843
        %1972 = vst [vmem:[%s295 + $0x270] sm:$0xff] %v1844
        %1973 = vst [vmem:[%s295 + $0x278] sm:$0xff] %v1845
        %1974 = vst [vmem:[%s295 + $0x280] sm:$0xff] %v1846
        %1975 = vst [vmem:[%s295 + $0x288] sm:$0xff] %v1847
        %1976 = vst [vmem:[%s295 + $0x290] sm:$0xff] %v1848
        %1977 = vst [vmem:[%s295 + $0x298] sm:$0xff] %v1849
        %1978 = vst [vmem:[%s295 + $0x2a0] sm:$0xff] %v1850
        %1979 = vst [vmem:[%s295 + $0x2a8] sm:$0xff] %v1851
        %1980 = vst [vmem:[%s295 + $0x2b0] sm:$0xff] %v1852
        %1981 = vst [vmem:[%s295 + $0x2b8] sm:$0xff] %v1853
        %1982 = vst [vmem:[%s295 + $0x2c0] sm:$0xff] %v1854
        %1983 = vst [vmem:[%s295 + $0x2c8] sm:$0xff] %v1855
        %1984 = vst [vmem:[%s295 + $0x2d0] sm:$0xff] %v1856
        %1985 = vst [vmem:[%s295 + $0x2d8] sm:$0xff] %v1857
        %1986 = vst [vmem:[%s295 + $0x2e0] sm:$0xff] %v1858
        %1987 = vst [vmem:[%s295 + $0x2e8] sm:$0xff] %v1859
        %1988 = vst [vmem:[%s295 + $0x2f0] sm:$0xff] %v1860
        %1989 = vst [vmem:[%s295 + $0x2f8] sm:$0xff] %v1861
        %1990 = vst [vmem:[%s295 + $0x300] sm:$0xff] %v1862
        %1991 = vst [vmem:[%s295 + $0x308] sm:$0xff] %v1863
        %1992 = vst [vmem:[%s295 + $0x310] sm:$0xff] %v1864
        %1993 = vst [vmem:[%s295 + $0x318] sm:$0xff] %v1865
        %1994 = vst [vmem:[%s295 + $0x320] sm:$0xff] %v1866
        %1995 = vst [vmem:[%s295 + $0x328] sm:$0xff] %v1867
        %1996 = vst [vmem:[%s295 + $0x330] sm:$0xff] %v1868
        %1997 = vst [vmem:[%s295 + $0x338] sm:$0xff] %v1869
        %1998 = vst [vmem:[%s295 + $0x340] sm:$0xff] %v1870
        %1999 = vst [vmem:[%s295 + $0x348] sm:$0xff] %v1871
        %2000 = vst [vmem:[%s295 + $0x350] sm:$0xff] %v1872
        %2001 = vst [vmem:[%s295 + $0x358] sm:$0xff] %v1873
        %2002 = vst [vmem:[%s295 + $0x360] sm:$0xff] %v1874
        %2003 = vst [vmem:[%s295 + $0x368] sm:$0xff] %v1875
        %2004 = vst [vmem:[%s295 + $0x370] sm:$0xff] %v1876
        %2005 = vst [vmem:[%s295 + $0x378] sm:$0xff] %v1877
        %2006 = vst [vmem:[%s295 + $0x380] sm:$0xff] %v1878
        %2007 = vst [vmem:[%s295 + $0x388] sm:$0xff] %v1879
        %2008 = vst [vmem:[%s295 + $0x390] sm:$0xff] %v1880
        %2009 = vst [vmem:[%s295 + $0x398] sm:$0xff] %v1881
        %2010 = vst [vmem:[%s295 + $0x3a0] sm:$0xff] %v1882
        %2011 = vst [vmem:[%s295 + $0x3a8] sm:$0xff] %v1883
        %2012 = vst [vmem:[%s295 + $0x3b0] sm:$0xff] %v1884
        %2013 = vst [vmem:[%s295 + $0x3b8] sm:$0xff] %v1885
        %2014 = vst [vmem:[%s295 + $0x3c0] sm:$0xff] %v1886
        %2015 = vst [vmem:[%s295 + $0x3c8] sm:$0xff] %v1887
        %2016 = vst [vmem:[%s295 + $0x3d0] sm:$0xff] %v1888
        %2017 = vst [vmem:[%s295 + $0x3d8] sm:$0xff] %v1889
        %2018 = vst [vmem:[%s295 + $0x3e0] sm:$0xff] %v1890
        %2019 = vst [vmem:[%s295 + $0x3e8] sm:$0xff] %v1891
        %2020 = vst [vmem:[%s295 + $0x3f0] sm:$0xff] %v1892
        %2021 = vst [vmem:[%s295 + $0x3f8] sm:$0xff] %v1893
        %s2022 = sand.u32 %s136, 1
        %s2023 = scalar_lea.sflag [#allocation4], %s2022
        %s2024 = sand.u32 %s136, 1
        %s2025 = smul.addr %s2024, 1024
        %s2026 = scalar_lea.vmem [#allocation8], %s2025
        // Predicated region
        $region49: #{tpu_custom_call.1} parent=35 // pred_check
          %p2027 = pneg %p146
        $region50: #{tpu_custom_call.1} parent=35 // pred_check_branch
          %2029 = sbr.rel (%p2027) target = $region52
        $region51: #{tpu_custom_call.1} parent=35 // pred_region
          %s2031 = ssub.s32 16384, 16384
          %2032 = vsyncadd %s2023, %s2031
          %s2033 = smul.addr %s24, 128
          %s2034 = smul.addr %s2033, 128
          %s2035 = scalar_lea.hbm %s4, %s2034
          %s2036 = sshll.u32 %s2026, 4
          %s2037 = int_to_ptr.vmem [resolvable:$true] %s2036
          %2042 = dma.vmem_to_hbm [thread:$0]  %s2037, 16384, %s2035, %s2023, 128, 128, 8
        $region52: #{tpu_custom_call.1} parent=35 // pred_fallthru
          _
      $region36: #{tpu_custom_call.1} parent=5 // pred_fallthru
        _
      %p2043 = scmp.le.s32.totalorder 2, %s19
      // Predicated region
      $region53: #{tpu_custom_call.1} parent=5 // pred_check
        %p2044 = pneg %p2043
      $region54: #{tpu_custom_call.1} parent=5 // pred_check_branch
        %2046 = sbr.rel (%p2044) target = $region56
      $region55: #{tpu_custom_call.1} parent=5 // pred_region
        %s2047 = ssub.s32 %s19, 2
        // Predicated region
        $region57: #{tpu_custom_call.1} parent=55 // pred_check
          %p2048 = pneg %p152
        $region58: #{tpu_custom_call.1} parent=55 // pred_check_branch
          %2050 = sbr.rel (%p2048) target = $region60
        $region59: #{tpu_custom_call.1} parent=55 // pred_region
          %s2051 = sand.u32 %s137, 1
          %s2052 = scalar_lea.sflag [#allocation4], %s2051
          %s2053 = sand.u32 %s137, 1
          %s2054 = smul.addr %s2053, 1024
          %s2055 = scalar_lea.vmem [#allocation8], %s2054
          %2056 = dma.done %s2052, 16384
        $region60: #{tpu_custom_call.1} parent=55 // pred_fallthru
          _
      $region56: #{tpu_custom_call.1} parent=5 // pred_fallthru
        _
    $region6: #{tpu_custom_call.1} parent=1 // loop_footer
      %s23 = sadd.s32 1, %s19
    $region7: #{tpu_custom_call.1} parent=1 // loop_footer_branch
      %18 = sbr.rel target = $region3
    $region8: #{tpu_custom_call.1} parent=1 // loop_exit
      _
    %2057 = vsyncpa [#allocation3], 1
    %s2058 = scalar_lea.sflag [#allocation3], 1
    %2059 = vsyncpa %s2058, 1
    %2060 = vsyncpa [#allocation6], 1
    %s2061 = scalar_lea.sflag [#allocation6], 1
    %2062 = vsyncpa %s2061, 1
    %2063 = vsyncpa [#allocation4], 1
    %s2064 = scalar_lea.sflag [#allocation4], 1
    %2065 = vsyncpa %s2064, 1

</llo_original>
